<compile_context>
chip_gen: v7x
topology: tpu7x:2x2x1
jax: 0.10.0
libtpu: 0.0.40
codegen_flags: <defaults>
</compile_context>

<pallas_src>
import math

import numpy as np
import jax
import jax.numpy as jnp
from jax.experimental import pallas as pl
from jax.experimental.pallas import tpu as pltpu


def _round_up(x, m):
    return ((x + m - 1) // m) * m


def _pad2(x, rows, cols, dtype=None):
    dt = dtype if dtype is not None else x.dtype
    out = jnp.zeros((rows, cols), dt)
    return out.at[: x.shape[0], : x.shape[1]].set(x.astype(dt))


def sage_cv_kernel(a_ref, hdelta_ref, hdst_ref, agg_ref, dinv_ref,   # streamed inputs
                   w_dst_ref, w_neigh_ref, b_ref,                    # resident inputs
                   out_ref,                                          # output
                   acc_ref):                                         # VMEM scratch accumulator (f32)
    k = pl.program_id(1)

    # --- init the reduction accumulator on the first src tile ---
    @pl.when(k == 0)
    def _():
        acc_ref[...] = jnp.zeros_like(acc_ref)

    # --- accumulate A01 @ hdelta (bf16 MXU operands, f32 accumulation) ---
    acc_ref[...] += jnp.dot(a_ref[...], hdelta_ref[...],
                            preferred_element_type=jnp.float32)          # [tm, F]

    # --- epilogue on the last src tile: mean scale + agg + linear (split cat) + bias + ReLU ---
    @pl.when(k == pl.num_programs(1) - 1)
    def _():
        # f32 1/deg scaling gives exact mean semantics (0 for zero-degree rows).
        h_neigh = (agg_ref[...] + dinv_ref[...] * acc_ref[...]).astype(jnp.bfloat16)
        h = (jnp.dot(hdst_ref[...], w_dst_ref[...],
                     preferred_element_type=jnp.float32)                 # H_dst part of the cat
             + jnp.dot(h_neigh, w_neigh_ref[...],
                       preferred_element_type=jnp.float32)               # h_neigh part of the cat
             + b_ref[...])                                               # bias [1, out] broadcast
        out_ref[...] = jnp.maximum(h, 0.0).astype(out_ref.dtype)         # ReLU


def _vmem_estimate(tm, tk, f_pad, o_pad, out_bytes):
    """Rough per-step VMEM footprint (double-buffered streams + resident blocks + scratch)."""
    streamed = 2 * (tm * tk * 2          # A tile (bf16)
                    + tk * f_pad * 2     # hdelta tile (bf16)
                    + tm * f_pad * 2     # H_dst tile (bf16)
                    + tm * f_pad * 4     # agg tile (f32)
                    + tm * 4             # 1/deg tile (f32)
                    + tm * o_pad * out_bytes)   # output tile
    resident = 2 * (2 * f_pad * o_pad * 2 + o_pad * 4)   # W_dst + W_neigh + bias (dbl-buffered)
    scratch = tm * f_pad * 4                              # f32 accumulator
    return streamed + resident + scratch


def sage_conv_with_cv(adj, h_src, hbar_src, h_dst, agg_hbar_dst, W, b,
                      *, tm=512, tk=1024, out_dtype=jnp.float32,
                      vmem_budget_bytes=48 * 1024 * 1024):
    """Pallas SAGEConvWithCV forward (training branch).

    adj : [n_dst, n_src] 0/1 in-adjacency of the DGL block (dst rows, src cols).
    W   : PyTorch nn.Linear layout [out_feats, 2*in_feats];  b : [out_feats].
    """
    n_dst, n_src = adj.shape
    out_feats, two_in = W.shape
    in_feats = two_in // 2
    out_bytes = int(np.dtype(out_dtype).itemsize)

    f_pad = _round_up(in_feats, 128)
    o_pad = _round_up(out_feats, 128)

    # --- tile selection under an explicit VMEM budget (v7x has only 64 MiB / TensorCore) ---
    tm = min(tm, _round_up(n_dst, 8))         # dst-row tile (sublane multiple of 8)
    tk = min(tk, _round_up(n_src, 128))       # src-row / reduction tile (lane multiple of 128)
    while _vmem_estimate(tm, tk, f_pad, o_pad, out_bytes) > vmem_budget_bytes:
        if tk > 128:
            tk = max(128, _round_up(tk // 2, 128))
        elif tm > 8:
            tm = max(8, _round_up(tm // 2, 8))
        else:
            break
    # >= 2 dst tiles when possible: the "parallel" i axis shards across v7x's two TensorCores.
    if tm >= n_dst and n_dst > 8:
        tm = _round_up((n_dst + 1) // 2, 8)

    m_pad = _round_up(n_dst, tm)
    k_pad = _round_up(n_src, tk)
    grid = (m_pad // tm, k_pad // tk)

    # --- precompute hdelta once (f32 subtract), stream it as a single bf16 tensor ---
    hdelta_p = _pad2(h_src - hbar_src, k_pad, f_pad, jnp.bfloat16)

    # NOTE: when the same block/graph is reused across layers, the padded adjacency + deg_inv
    # prep below should be hoisted out of the per-call path (it is a full HBM pass over A).
    a_p = _pad2(adj, m_pad, k_pad, jnp.bfloat16)                        # exact 0/1 values
    deg = adj.sum(axis=1, keepdims=True)
    deg_inv = jnp.where(deg > 0, 1.0 / jnp.maximum(deg, 1.0), 0.0)      # DGL mean: 0 if deg == 0
    dinv_p = _pad2(deg_inv, m_pad, 1, jnp.float32)

    hdst_p  = _pad2(h_dst,        m_pad, f_pad, jnp.bfloat16)           # only ever an MXU operand
    agg_p   = _pad2(agg_hbar_dst, m_pad, f_pad, jnp.float32)
    w_dst_p = _pad2(W[:, :in_feats].T, f_pad, o_pad, jnp.bfloat16)      # [F, out]
    w_ngh_p = _pad2(W[:, in_feats:].T, f_pad, o_pad, jnp.bfloat16)      # [F, out]
    b_p     = _pad2(b.reshape(1, -1),  1,     o_pad, jnp.float32)

    grid_spec = pltpu.PrefetchScalarGridSpec(
        num_scalar_prefetch=0,
        grid=grid,
        in_specs=[
            pl.BlockSpec((tm, tk),       lambda i, k: (i, k)),   # A (0/1 bf16)
            pl.BlockSpec((tk, f_pad),    lambda i, k: (k, 0)),   # hdelta (bf16); resident if grid[1]==1
            pl.BlockSpec((tm, f_pad),    lambda i, k: (i, 0)),   # H_dst (bf16, reused over k)
            pl.BlockSpec((tm, f_pad),    lambda i, k: (i, 0)),   # agg_HBar_dst (f32)
            pl.BlockSpec((tm, 1),        lambda i, k: (i, 0)),   # 1/deg (f32)
            pl.BlockSpec((f_pad, o_pad), lambda i, k: (0, 0)),   # W_dst  (resident)
            pl.BlockSpec((f_pad, o_pad), lambda i, k: (0, 0)),   # W_neigh (resident)
            pl.BlockSpec((1, o_pad),     lambda i, k: (0, 0)),   # bias   (resident)
        ],
        out_specs=pl.BlockSpec((tm, o_pad), lambda i, k: (i, 0)),
        scratch_shapes=[pltpu.VMEM((tm, f_pad), jnp.float32)],
    )

    out_padded = pl.pallas_call(
        sage_cv_kernel,
        out_shape=jax.ShapeDtypeStruct((m_pad, o_pad), out_dtype),
        grid_spec=grid_spec,
        compiler_params=pltpu.CompilerParams(
            dimension_semantics=("parallel", "arbitrary"),
            vmem_limit_bytes=int(vmem_budget_bytes),
        ),
    )(a_p, hdelta_p, hdst_p, agg_p, dinv_p, w_dst_p, w_ngh_p, b_p)

    return out_padded[:n_dst, :out_feats]


def reference(adj, h_src, hbar_src, h_dst, agg_hbar_dst, W, b):
    deg = adj.sum(axis=1, keepdims=True)
    a_norm = jnp.where(deg > 0, adj / jnp.maximum(deg, 1.0), 0.0)
    hdelta_new = a_norm @ (h_src - hbar_src)
    h_neigh = agg_hbar_dst + hdelta_new
    h = jnp.concatenate([h_dst, h_neigh], axis=1) @ W.T + b
    return jnp.maximum(h, 0.0)


if __name__ == "__main__":
    key = jax.random.PRNGKey(0)
    k1, k2, k3, k4 = jax.random.split(key, 4)

    # Deliberately non-aligned sizes to exercise padding + the >=2-dst-tile clamp.
    n_src, n_dst = 1000, 200
    in_feats, out_feats = 96, 80

    # --- deterministic parameter init (matches module __init__ semantics) ---
    gain = math.sqrt(2.0)  # nn.init.calculate_gain('relu')
    bound = gain * math.sqrt(6.0 / (2 * in_feats + out_feats))
    W = jax.random.uniform(k1, (out_feats, 2 * in_feats), jnp.float32,
                           minval=-bound, maxval=bound)   # xavier_uniform_
    b = jnp.zeros((out_feats,), jnp.float32)              # constant_(bias, 0)

    # --- deterministic block (graph): random bipartite 0/1 adjacency ---
    adj = (jax.random.uniform(k2, (n_dst, n_src)) < 0.3).astype(jnp.float32)
    adj = adj.at[:, 0].set(1.0)                            # ensure every dst has a neighbor
    deg = adj.sum(axis=1, keepdims=True)
    a_norm = jnp.where(deg > 0, adj / jnp.maximum(deg, 1.0), 0.0)

    # --- deterministic node features ---
    h_src = jax.random.normal(k3, (n_src, in_feats), jnp.float32)
    hbar_src = jax.random.normal(k4, (n_src, in_feats), jnp.float32)
    h_dst = h_src[:n_dst]                                  # dst nodes are a prefix of src (DGL block convention)
    agg_hbar_dst = a_norm @ hbar_src                       # historical aggregated embeddings

    out = sage_conv_with_cv(adj, h_src, hbar_src, h_dst, agg_hbar_dst, W, b)
    out = jax.block_until_ready(out)

    ref = reference(adj, h_src, hbar_src, h_dst, agg_hbar_dst, W, b)
    assert out.shape == (n_dst, out_feats)
    # bf16 MXU operands (f32 accumulation, exact 0/1 adjacency, f32 1/deg scaling) vs f32 reference.
    assert jnp.allclose(out, ref, atol=5e-2, rtol=5e-2), float(jnp.max(jnp.abs(out - ref)))
    print("KERNEL_OK")
</pallas_src>

<mosaic_0001>
module attributes {stable_mosaic.version = 11 : i64} {
  func.func @sage_cv_kernel(%arg0: i32, %arg1: i32, %arg2: memref<104x1024xbf16, #tpu.memory_space<vmem>>, %arg3: memref<1024x128xbf16, #tpu.memory_space<vmem>>, %arg4: memref<104x128xbf16, #tpu.memory_space<vmem>>, %arg5: memref<104x128xf32, #tpu.memory_space<vmem>>, %arg6: memref<104x1xf32, #tpu.memory_space<vmem>>, %arg7: memref<128x128xbf16, #tpu.memory_space<vmem>>, %arg8: memref<128x128xbf16, #tpu.memory_space<vmem>>, %arg9: memref<1x128xf32, #tpu.memory_space<vmem>>, %arg10: memref<104x128xf32, #tpu.memory_space<vmem>>, %arg11: memref<104x128xf32, #tpu.memory_space<vmem>>) attributes {dimension_semantics = [#tpu.dimension_semantics<parallel>, #tpu.dimension_semantics<arbitrary>], iteration_bounds = array<i64: 2, 1>, scalar_prefetch = 0 : i64, scratch_operands = 1 : i64, tpu.core_type = #tpu.core_type<tc>, window_params = [{transform_indices = @transform_0, window_bounds = array<i64: 104, 1024>}, {transform_indices = @transform_1, window_bounds = array<i64: 1024, 128>}, {transform_indices = @transform_2, window_bounds = array<i64: 104, 128>}, {transform_indices = @transform_3, window_bounds = array<i64: 104, 128>}, {transform_indices = @transform_4, window_bounds = array<i64: 104, 1>}, {pipeline_mode = #tpu.pipeline_mode<synchronous>, transform_indices = @transform_5, window_bounds = array<i64: 128, 128>}, {pipeline_mode = #tpu.pipeline_mode<synchronous>, transform_indices = @transform_6, window_bounds = array<i64: 128, 128>}, {pipeline_mode = #tpu.pipeline_mode<synchronous>, transform_indices = @transform_7, window_bounds = array<i64: 1, 128>}, {transform_indices = @transform_8, window_bounds = array<i64: 104, 128>}]} {
    %c0_i32 = arith.constant 0 : i32
    %0 = arith.cmpi eq, %arg1, %c0_i32 : i32
    %1 = arith.extui %0 : i1 to i32
    %c0_i32_0 = arith.constant 0 : i32
    %2 = arith.cmpi ne, %1, %c0_i32_0 : i32
    scf.if %2 {
      %cst_10 = arith.constant 0.000000e+00 : f32
      %12 = vector.broadcast %cst_10 : f32 to vector<104x128xf32>
      %c0_11 = arith.constant 0 : index
      %c0_12 = arith.constant 0 : index
      %13 = vector.load %arg11[%c0_11, %c0_12] : memref<104x128xf32, #tpu.memory_space<vmem>>, vector<104x128xf32>
      tpu.vector_store %arg11[%c0_11, %c0_12], %12 {strides = array<i32>} : memref<104x128xf32, #tpu.memory_space<vmem>>, vector<104x128xf32>,
    } else {
    }
    %c0 = arith.constant 0 : index
    %c0_1 = arith.constant 0 : index
    %3 = vector.load %arg11[%c0, %c0_1] : memref<104x128xf32, #tpu.memory_space<vmem>>, vector<104x128xf32>
    %c0_2 = arith.constant 0 : index
    %c0_3 = arith.constant 0 : index
    %4 = vector.load %arg2[%c0_2, %c0_3] : memref<104x1024xbf16, #tpu.memory_space<vmem>>, vector<104x1024xbf16>
    %c0_4 = arith.constant 0 : index
    %c0_5 = arith.constant 0 : index
    %5 = vector.load %arg3[%c0_4, %c0_5] : memref<1024x128xbf16, #tpu.memory_space<vmem>>, vector<1024x128xbf16>
    %cst = arith.constant dense<0.000000e+00> : vector<104x128xf32>
    %6 = tpu.matmul %4, %5, %cst {dimension_numbers = #tpu.dot_dimension_numbers<[1], [0], [0], [1], [0, 0, 1, 1], [], []>} : vector<104x1024xbf16>, vector<1024x128xbf16>, vector<104x128xf32> -> vector<104x128xf32>
    %7 = arith.addf %3, %6 : vector<104x128xf32>
    %c0_6 = arith.constant 0 : index
    %c0_7 = arith.constant 0 : index
    %8 = vector.load %arg11[%c0_6, %c0_7] : memref<104x128xf32, #tpu.memory_space<vmem>>, vector<104x128xf32>
    tpu.vector_store %arg11[%c0_6, %c0_7], %7 {strides = array<i32>} : memref<104x128xf32, #tpu.memory_space<vmem>>, vector<104x128xf32>,
    %c0_i32_8 = arith.constant 0 : i32
    %9 = arith.cmpi eq, %arg1, %c0_i32_8 : i32
    %10 = arith.extui %9 : i1 to i32
    %c0_i32_9 = arith.constant 0 : i32
    %11 = arith.cmpi ne, %10, %c0_i32_9 : i32
    scf.if %11 {
      %c0_10 = arith.constant 0 : index
      %c0_11 = arith.constant 0 : index
      %12 = vector.load %arg5[%c0_10, %c0_11] : memref<104x128xf32, #tpu.memory_space<vmem>>, vector<104x128xf32>
      %c0_12 = arith.constant 0 : index
      %c0_13 = arith.constant 0 : index
      %13 = vector.load %arg6[%c0_12, %c0_13] : memref<104x1xf32, #tpu.memory_space<vmem>>, vector<104x1xf32>
      %c0_14 = arith.constant 0 : index
      %c0_15 = arith.constant 0 : index
      %14 = vector.load %arg11[%c0_14, %c0_15] : memref<104x128xf32, #tpu.memory_space<vmem>>, vector<104x128xf32>
      %15 = vector.broadcast %13 : vector<104x1xf32> to vector<104x128xf32>
      %16 = arith.mulf %15, %14 : vector<104x128xf32>
      %17 = arith.addf %12, %16 : vector<104x128xf32>
      %18 = arith.truncf %17 : vector<104x128xf32> to vector<104x128xbf16>
      %c0_16 = arith.constant 0 : index
      %c0_17 = arith.constant 0 : index
      %19 = vector.load %arg4[%c0_16, %c0_17] : memref<104x128xbf16, #tpu.memory_space<vmem>>, vector<104x128xbf16>
      %c0_18 = arith.constant 0 : index
      %c0_19 = arith.constant 0 : index
      %20 = vector.load %arg7[%c0_18, %c0_19] : memref<128x128xbf16, #tpu.memory_space<vmem>>, vector<128x128xbf16>
      %cst_20 = arith.constant dense<0.000000e+00> : vector<104x128xf32>
      %21 = tpu.matmul %19, %20, %cst_20 {dimension_numbers = #tpu.dot_dimension_numbers<[1], [0], [0], [1], [0, 0, 1, 1], [], []>} : vector<104x128xbf16>, vector<128x128xbf16>, vector<104x128xf32> -> vector<104x128xf32>
      %c0_21 = arith.constant 0 : index
      %c0_22 = arith.constant 0 : index
      %22 = vector.load %arg8[%c0_21, %c0_22] : memref<128x128xbf16, #tpu.memory_space<vmem>>, vector<128x128xbf16>
      %cst_23 = arith.constant dense<0.000000e+00> : vector<104x128xf32>
      %23 = tpu.matmul %18, %22, %cst_23 {dimension_numbers = #tpu.dot_dimension_numbers<[1], [0], [0], [1], [0, 0, 1, 1], [], []>} : vector<104x128xbf16>, vector<128x128xbf16>, vector<104x128xf32> -> vector<104x128xf32>
      %24 = arith.addf %21, %23 : vector<104x128xf32>
      %c0_24 = arith.constant 0 : index
      %c0_25 = arith.constant 0 : index
      %25 = vector.load %arg9[%c0_24, %c0_25] : memref<1x128xf32, #tpu.memory_space<vmem>>, vector<1x128xf32>
      %26 = vector.broadcast %25 : vector<1x128xf32> to vector<104x128xf32>
      %27 = arith.addf %24, %26 : vector<104x128xf32>
      %cst_26 = arith.constant 0.000000e+00 : f32
      %28 = vector.broadcast %cst_26 : f32 to vector<104x128xf32>
      %29 = arith.maximumf %27, %28 : vector<104x128xf32>
      %c0_27 = arith.constant 0 : index
      %c0_28 = arith.constant 0 : index
      %30 = vector.load %arg10[%c0_27, %c0_28] : memref<104x128xf32, #tpu.memory_space<vmem>>, vector<104x128xf32>
      tpu.vector_store %arg10[%c0_27, %c0_28], %29 {strides = array<i32>} : memref<104x128xf32, #tpu.memory_space<vmem>>, vector<104x128xf32>,
    } else {
    }
    return
  }
  func.func @transform_0(%arg0: i32, %arg1: i32) -> (i32, i32) {
    %c0_i32 = arith.constant 0 : i32
    return %arg0, %arg1 : i32, i32
  }
  func.func @transform_1(%arg0: i32, %arg1: i32) -> (i32, i32) {
    %c0_i32 = arith.constant 0 : i32
    %c0_i32_0 = arith.constant 0 : i32
    return %arg1, %c0_i32 : i32, i32
  }
  func.func @transform_2(%arg0: i32, %arg1: i32) -> (i32, i32) {
    %c0_i32 = arith.constant 0 : i32
    %c0_i32_0 = arith.constant 0 : i32
    return %arg0, %c0_i32 : i32, i32
  }
  func.func @transform_3(%arg0: i32, %arg1: i32) -> (i32, i32) {
    %c0_i32 = arith.constant 0 : i32
    %c0_i32_0 = arith.constant 0 : i32
    return %arg0, %c0_i32 : i32, i32
  }
  func.func @transform_4(%arg0: i32, %arg1: i32) -> (i32, i32) {
    %c0_i32 = arith.constant 0 : i32
    %c0_i32_0 = arith.constant 0 : i32
    return %arg0, %c0_i32 : i32, i32
  }
  func.func @transform_5(%arg0: i32, %arg1: i32) -> (i32, i32) {
    %c0_i32 = arith.constant 0 : i32
    %c0_i32_0 = arith.constant 0 : i32
    %c0_i32_1 = arith.constant 0 : i32
    return %c0_i32, %c0_i32_0 : i32, i32
  }
  func.func @transform_6(%arg0: i32, %arg1: i32) -> (i32, i32) {
    %c0_i32 = arith.constant 0 : i32
    %c0_i32_0 = arith.constant 0 : i32
    %c0_i32_1 = arith.constant 0 : i32
    return %c0_i32, %c0_i32_0 : i32, i32
  }
  func.func @transform_7(%arg0: i32, %arg1: i32) -> (i32, i32) {
    %c0_i32 = arith.constant 0 : i32
    %c0_i32_0 = arith.constant 0 : i32
    %c0_i32_1 = arith.constant 0 : i32
    return %c0_i32, %c0_i32_0 : i32, i32
  }
  func.func @transform_8(%arg0: i32, %arg1: i32) -> (i32, i32) {
    %c0_i32 = arith.constant 0 : i32
    %c0_i32_0 = arith.constant 0 : i32
    return %arg0, %c0_i32 : i32, i32
  }
}

</mosaic_0001>

<llo_original>
// kernel: tpu_custom_call.1
$region0: #{tpu_custom_call.1}
  #allocation0 [shape = 'u32[]', space=smem, size = 0x4, offset = 0x4, fixed_abs, tag = 'smem constant byte address 0x4 - core index']
  #allocation1 [shape = 'u32[144,128]{1,0:T(1,128)}', space=vmem, size = 0x12000, scoped, tag = 'internal scratch']
  #allocation2 [shape = 'f32[104,128]{1,0:T(8,128)}', space=vmem, size = 0xd000, scoped, tag = 'scratch operand']
  %s0 = inlined_call_operand.hbm [shape: bf16[208,1024], index: 0, kind: input, shape index: {}]
  %s1 = inlined_call_operand.hbm [shape: bf16[1024,128], index: 1, kind: input, shape index: {}]
  %s2 = inlined_call_operand.hbm [shape: bf16[208,128], index: 2, kind: input, shape index: {}]
  %s3 = inlined_call_operand.vmem [shape: f32[208,128], index: 3, kind: input, shape index: {}]
  %s4 = inlined_call_operand.vmem [shape: f32[208,1], index: 4, kind: input, shape index: {}]
  %s5 = inlined_call_operand.hbm [shape: bf16[128,128], index: 5, kind: input, shape index: {}]
  %s6 = inlined_call_operand.hbm [shape: bf16[128,128], index: 6, kind: input, shape index: {}]
  %s7 = inlined_call_operand.vmem [shape: f32[1,128], index: 7, kind: input, shape index: {}]
  %s8 = inlined_call_operand.hbm [shape: f32[208,128], index: 8, kind: output, shape index: {}]
  %s9 = sld [smem:[#allocation0]]
  $region93: #{tpu_custom_call.1} parent=0
    _
  %s11 = ssub.s32 1, %s9
  %s12 = scalar_select 0, %s11, %s9
  $region1: #{tpu_custom_call.1} parent=0
    #allocation3 [shape = 'u8[425984]{0}', space=vmem, size = 0x68000, scoped, tag = 'input window, operand 0']
    #allocation4 [shape = 's32[2]{0}', space=sflag, size = 0x8, scoped, tag = 'scoped memory for tpu_custom_call.1']
    #allocation5 [shape = 's32[2]{0}', space=sflag, size = 0x8, scoped, tag = 'scoped memory for tpu_custom_call.1']
    #allocation6 [shape = 'u8[262144]{0}', space=vmem, size = 0x40000, scoped, tag = 'input window, operand 1, single buffered']
    #allocation7 [shape = 's32[1]{0}', space=sflag, size = 0x4, scoped, tag = 'scoped memory for tpu_custom_call.1']
    #allocation8 [shape = 'u8[53248]{0}', space=vmem, size = 0xd000, scoped, tag = 'input window, operand 2']
    #allocation9 [shape = 'u8[32768]{0}', space=vmem, size = 0x8000, scoped, tag = 'input window, operand 5, single buffered']
    #allocation10 [shape = 'u8[32768]{0}', space=vmem, size = 0x8000, scoped, tag = 'input window, operand 6, single buffered']
    #allocation11 [shape = 's32[1]{0}', space=sflag, size = 0x4, scoped, tag = 'scoped memory for tpu_custom_call.1']
    #allocation12 [shape = 'u8[106496]{0}', space=vmem, size = 0x1a000, scoped, tag = 'output window, operand 0']
    %13 = vsyncpa [#allocation4], 0
    %s14 = scalar_lea.sflag [#allocation4], 1
    %15 = vsyncpa %s14, 0
    %16 = vsyncpa [#allocation7], 0
    %17 = vsyncpa [#allocation11], 0
    %18 = vsyncpa [#allocation5], 0
    %s19 = scalar_lea.sflag [#allocation5], 1
    %20 = vsyncpa %s19, 0
    loop: start=0, step=1, limit=4
    $region2: #{tpu_custom_call.1} parent=1 // loop_pre_header
      _
    $region3: #{tpu_custom_call.1} parent=1 // loop_header
      %s22 = sphi 0, %s26
      %p23 = scmp.ge.s32.totalorder %s22, 4
      %s29 = sphi 0, %s41
      %s30 = sphi 0, %s37
      %s31 = sphi 0, %s29
      %s32 = sphi 0, %s30
      %s33 = sphi 0, %s31
      %s34 = sphi 0, %s32
      %s46 = sphi 0, %s48
      %s49 = sphi 0, %s46
      %s50 = sphi 0, %s49
      %s66 = sphi 0, %s50
      %s72 = sphi 0, %s74
      %s75 = sphi 0, %s72
      %s76 = sphi 0, %s75
      %s92 = sphi 0, %s76
      %s98 = sphi 0, %s100
      %s101 = sphi 0, %s98
      %s102 = sphi 0, %s101
      %s118 = sphi 0, %s102
      %s124 = sphi 0, %s126
      %s127 = sphi 0, %s124
      %s128 = sphi 0, %s127
      %s144 = sphi 0, %s128
      %s150 = sphi 0, %s152
      %s153 = sphi 0, %s150
      %s154 = sphi 0, %s153
      %s170 = sphi 0, %s154
      %s174 = sphi 0, %s174
      %s176 = sphi 0, %s174
      %s177 = sphi 0, %s176
      %s191 = sphi 0, %s177
      %s195 = sphi 0, %s195
      %s197 = sphi 0, %s195
      %s198 = sphi 0, %s197
      %s212 = sphi 0, %s198
      %s216 = sphi 0, %s216
      %s218 = sphi 0, %s216
      %s219 = sphi 0, %s218
      %s233 = sphi 0, %s219
      %s239 = sphi 0, %s241
      %s242 = sphi 0, %s239
      %s243 = sphi 0, %s242
      %s259 = sphi 0, %s243
    $region4: #{tpu_custom_call.1} parent=1 // loop_header_branch
      %25 = sbr.rel (%p23) target = $region8
    $region5: #{tpu_custom_call.1} parent=1 // loop_body
      %s27 = ssub.s32 %s22, 1
      %s28 = ssub.s32 %s22, 2
      %s35 = sadd.s32 1, %s30
      %p36 = scmp.ge.s32.totalorder %s35, 1
      %s37 = scalar_select %p36, 0, %s35
      %s38 = sadd.s32 1, %s29
      %s39 = scalar_select %p36, %s38, %s29
      %p40 = scmp.ge.s32.totalorder %s39, 2
      %s41 = scalar_select %p40, 0, %s39
      %s42 = ssub.s32 %s29, %s41
      %s43 = ssub.s32 %s30, %s37
      %s44 = sor.u32 %s42, %s43
      %p45 = scmp.eq.s32.totalorder %s44, 0
      %s47 = sadd.s32 %s46, 1
      %s48 = scalar_select %p45, %s46, %s47
      %p51 = pneg %p45
      %p52 = scmp.eq.s32.totalorder %s22, 1
      %p53 = por %p51, %p52
      %p54 = scmp.ne.s32.totalorder %s46, %s49
      %p55 = scmp.eq.s32.totalorder %s22, 0
      %p56 = por %p54, %p55
      %p57 = scmp.ne.s32.totalorder %s46, %s49
      %p58 = scmp.eq.s32.totalorder %s27, 1
      %p59 = por %p57, %p58
      %p60 = scmp.ne.s32.totalorder %s49, %s50
      %p61 = scmp.eq.s32.totalorder %s27, 0
      %p62 = por %p60, %p61
      %p63 = scmp.ne.s32.totalorder %s49, %s50
      %p64 = scmp.eq.s32.totalorder %s28, 1
      %p65 = por %p63, %p64
      %p67 = scmp.ne.s32.totalorder %s50, %s66
      %p68 = scmp.eq.s32.totalorder %s28, 0
      %p69 = por %p67, %p68
      %s70 = ssub.s32 %s30, %s37
      %p71 = scmp.eq.s32.totalorder %s70, 0
      %s73 = sadd.s32 %s72, 1
      %s74 = scalar_select %p71, %s72, %s73
      %p77 = pneg %p71
      %p78 = scmp.eq.s32.totalorder %s22, 1
      %p79 = por %p77, %p78
      %p80 = scmp.ne.s32.totalorder %s72, %s75
      %p81 = scmp.eq.s32.totalorder %s22, 0
      %p82 = por %p80, %p81
      %p83 = scmp.ne.s32.totalorder %s72, %s75
      %p84 = scmp.eq.s32.totalorder %s27, 1
      %p85 = por %p83, %p84
      %p86 = scmp.ne.s32.totalorder %s75, %s76
      %p87 = scmp.eq.s32.totalorder %s27, 0
      %p88 = por %p86, %p87
      %p89 = scmp.ne.s32.totalorder %s75, %s76
      %p90 = scmp.eq.s32.totalorder %s28, 1
      %p91 = por %p89, %p90
      %p93 = scmp.ne.s32.totalorder %s76, %s92
      %p94 = scmp.eq.s32.totalorder %s28, 0
      %p95 = por %p93, %p94
      %s96 = ssub.s32 %s29, %s41
      %p97 = scmp.eq.s32.totalorder %s96, 0
      %s99 = sadd.s32 %s98, 1
      %s100 = scalar_select %p97, %s98, %s99
      %p103 = pneg %p97
      %p104 = scmp.eq.s32.totalorder %s22, 1
      %p105 = por %p103, %p104
      %p106 = scmp.ne.s32.totalorder %s98, %s101
      %p107 = scmp.eq.s32.totalorder %s22, 0
      %p108 = por %p106, %p107
      %p109 = scmp.ne.s32.totalorder %s98, %s101
      %p110 = scmp.eq.s32.totalorder %s27, 1
      %p111 = por %p109, %p110
      %p112 = scmp.ne.s32.totalorder %s101, %s102
      %p113 = scmp.eq.s32.totalorder %s27, 0
      %p114 = por %p112, %p113
      %p115 = scmp.ne.s32.totalorder %s101, %s102
      %p116 = scmp.eq.s32.totalorder %s28, 1
      %p117 = por %p115, %p116
      %p119 = scmp.ne.s32.totalorder %s102, %s118
      %p120 = scmp.eq.s32.totalorder %s28, 0
      %p121 = por %p119, %p120
      %s122 = ssub.s32 %s29, %s41
      %p123 = scmp.eq.s32.totalorder %s122, 0
      %s125 = sadd.s32 %s124, 1
      %s126 = scalar_select %p123, %s124, %s125
      %p129 = pneg %p123
      %p130 = scmp.eq.s32.totalorder %s22, 1
      %p131 = por %p129, %p130
      %p132 = scmp.ne.s32.totalorder %s124, %s127
      %p133 = scmp.eq.s32.totalorder %s22, 0
      %p134 = por %p132, %p133
      %p135 = scmp.ne.s32.totalorder %s124, %s127
      %p136 = scmp.eq.s32.totalorder %s27, 1
      %p137 = por %p135, %p136
      %p138 = scmp.ne.s32.totalorder %s127, %s128
      %p139 = scmp.eq.s32.totalorder %s27, 0
      %p140 = por %p138, %p139
      %p141 = scmp.ne.s32.totalorder %s127, %s128
      %p142 = scmp.eq.s32.totalorder %s28, 1
      %p143 = por %p141, %p142
      %p145 = scmp.ne.s32.totalorder %s128, %s144
      %p146 = scmp.eq.s32.totalorder %s28, 0
      %p147 = por %p145, %p146
      %s148 = ssub.s32 %s29, %s41
      %p149 = scmp.eq.s32.totalorder %s148, 0
      %s151 = sadd.s32 %s150, 1
      %s152 = scalar_select %p149, %s150, %s151
      %p155 = pneg %p149
      %p156 = scmp.eq.s32.totalorder %s22, 1
      %p157 = por %p155, %p156
      %p158 = scmp.ne.s32.totalorder %s150, %s153
      %p159 = scmp.eq.s32.totalorder %s22, 0
      %p160 = por %p158, %p159
      %p161 = scmp.ne.s32.totalorder %s150, %s153
      %p162 = scmp.eq.s32.totalorder %s27, 1
      %p163 = por %p161, %p162
      %p164 = scmp.ne.s32.totalorder %s153, %s154
      %p165 = scmp.eq.s32.totalorder %s27, 0
      %p166 = por %p164, %p165
      %p167 = scmp.ne.s32.totalorder %s153, %s154
      %p168 = scmp.eq.s32.totalorder %s28, 1
      %p169 = por %p167, %p168
      %p171 = scmp.ne.s32.totalorder %s154, %s170
      %p172 = scmp.eq.s32.totalorder %s28, 0
      %p173 = por %p171, %p172
      %s175 = sadd.s32 %s174, 1
      %p178 = scmp.eq.s32.totalorder %s22, 1
      %p179 = scmp.ne.s32.totalorder %s174, %s176
      %p180 = scmp.eq.s32.totalorder %s22, 0
      %p181 = por %p179, %p180
      %p182 = scmp.ne.s32.totalorder %s174, %s176
      %p183 = scmp.eq.s32.totalorder %s27, 1
      %p184 = por %p182, %p183
      %p185 = scmp.ne.s32.totalorder %s176, %s177
      %p186 = scmp.eq.s32.totalorder %s27, 0
      %p187 = por %p185, %p186
      %p188 = scmp.ne.s32.totalorder %s176, %s177
      %p189 = scmp.eq.s32.totalorder %s28, 1
      %p190 = por %p188, %p189
      %p192 = scmp.ne.s32.totalorder %s177, %s191
      %p193 = scmp.eq.s32.totalorder %s28, 0
      %p194 = por %p192, %p193
      %s196 = sadd.s32 %s195, 1
      %p199 = scmp.eq.s32.totalorder %s22, 1
      %p200 = scmp.ne.s32.totalorder %s195, %s197
      %p201 = scmp.eq.s32.totalorder %s22, 0
      %p202 = por %p200, %p201
      %p203 = scmp.ne.s32.totalorder %s195, %s197
      %p204 = scmp.eq.s32.totalorder %s27, 1
      %p205 = por %p203, %p204
      %p206 = scmp.ne.s32.totalorder %s197, %s198
      %p207 = scmp.eq.s32.totalorder %s27, 0
      %p208 = por %p206, %p207
      %p209 = scmp.ne.s32.totalorder %s197, %s198
      %p210 = scmp.eq.s32.totalorder %s28, 1
      %p211 = por %p209, %p210
      %p213 = scmp.ne.s32.totalorder %s198, %s212
      %p214 = scmp.eq.s32.totalorder %s28, 0
      %p215 = por %p213, %p214
      %s217 = sadd.s32 %s216, 1
      %p220 = scmp.eq.s32.totalorder %s22, 1
      %p221 = scmp.ne.s32.totalorder %s216, %s218
      %p222 = scmp.eq.s32.totalorder %s22, 0
      %p223 = por %p221, %p222
      %p224 = scmp.ne.s32.totalorder %s216, %s218
      %p225 = scmp.eq.s32.totalorder %s27, 1
      %p226 = por %p224, %p225
      %p227 = scmp.ne.s32.totalorder %s218, %s219
      %p228 = scmp.eq.s32.totalorder %s27, 0
      %p229 = por %p227, %p228
      %p230 = scmp.ne.s32.totalorder %s218, %s219
      %p231 = scmp.eq.s32.totalorder %s28, 1
      %p232 = por %p230, %p231
      %p234 = scmp.ne.s32.totalorder %s219, %s233
      %p235 = scmp.eq.s32.totalorder %s28, 0
      %p236 = por %p234, %p235
      %s237 = ssub.s32 %s29, %s41
      %p238 = scmp.eq.s32.totalorder %s237, 0
      %s240 = sadd.s32 %s239, 1
      %s241 = scalar_select %p238, %s239, %s240
      %p244 = pneg %p238
      %p245 = scmp.eq.s32.totalorder %s22, 1
      %p246 = por %p244, %p245
      %p247 = scmp.ne.s32.totalorder %s239, %s242
      %p248 = scmp.eq.s32.totalorder %s22, 0
      %p249 = por %p247, %p248
      %p250 = scmp.ne.s32.totalorder %s239, %s242
      %p251 = scmp.eq.s32.totalorder %s27, 1
      %p252 = por %p250, %p251
      %p253 = scmp.ne.s32.totalorder %s242, %s243
      %p254 = scmp.eq.s32.totalorder %s27, 0
      %p255 = por %p253, %p254
      %p256 = scmp.ne.s32.totalorder %s242, %s243
      %p257 = scmp.eq.s32.totalorder %s28, 1
      %p258 = por %p256, %p257
      %p260 = scmp.ne.s32.totalorder %s243, %s259
      %p261 = scmp.eq.s32.totalorder %s28, 0
      %p262 = por %p260, %p261
      %p263 = scmp.le.s32.totalorder 1, %s22
      %p264 = scmp.lt.s32.totalorder %s22, 3
      %p265 = pnand %p263, %p264
      %p266 = pneg %p265
      // Predicated region
      $region9: #{tpu_custom_call.1} parent=5 // pred_check
        _
      $region10: #{tpu_custom_call.1} parent=5 // pred_check_branch
        %268 = sbr.rel (%p265) target = $region12
      $region11: #{tpu_custom_call.1} parent=5 // pred_region
        %s269 = ssub.s32 %s22, 1
        // Predicated region
        $region13: #{tpu_custom_call.1} parent=11 // pred_check
          %p270 = pneg %p88
        $region14: #{tpu_custom_call.1} parent=11 // pred_check_branch
          %272 = sbr.rel (%p270) target = $region16
        $region15: #{tpu_custom_call.1} parent=11 // pred_region
          %s273 = smul.u32 128, %s32
          %s275 = ssub.s32 8192, 8192
          %276 = vsyncadd [#allocation7], %s275
          %s277 = smul.addr %s273, 64
          %s278 = scalar_lea.hbm %s1, %s277
          %s279 = sshll.u32 [#allocation6], 4
          %s280 = int_to_ptr.vmem [resolvable:$true] %s279
          %285 = dma.hbm_to_vmem [thread:$0]  %s278, 8192, %s280, [#allocation7], 64, 64, 4
        $region16: #{tpu_custom_call.1} parent=11 // pred_fallthru
          _
        // Predicated region
        $region17: #{tpu_custom_call.1} parent=11 // pred_check
          %p286 = pneg %p187
        $region18: #{tpu_custom_call.1} parent=11 // pred_check_branch
          %288 = sbr.rel (%p286) target = $region20
        $region19: #{tpu_custom_call.1} parent=11 // pred_region
          %s290 = ssub.s32 1024, 1024
          %291 = vsyncadd [#allocation7], %s290
          %s292 = sshll.u32 [#allocation9], 4
          %s293 = int_to_ptr.vmem [resolvable:$true] %s292
          %298 = dma.hbm_to_vmem [thread:$0]  %s5, 1024, %s293, [#allocation7], 64, 64, 4
        $region20: #{tpu_custom_call.1} parent=11 // pred_fallthru
          _
        // Predicated region
        $region21: #{tpu_custom_call.1} parent=11 // pred_check
          %p299 = pneg %p208
        $region22: #{tpu_custom_call.1} parent=11 // pred_check_branch
          %301 = sbr.rel (%p299) target = $region24
        $region23: #{tpu_custom_call.1} parent=11 // pred_region
          %s303 = ssub.s32 1024, 1024
          %304 = vsyncadd [#allocation11], %s303
          %s305 = sshll.u32 [#allocation10], 4
          %s306 = int_to_ptr.vmem [resolvable:$true] %s305
          %311 = dma.hbm_to_vmem [thread:$0]  %s6, 1024, %s306, [#allocation11], 64, 64, 4
        $region24: #{tpu_custom_call.1} parent=11 // pred_fallthru
          _
        // Predicated region
        $region25: #{tpu_custom_call.1} parent=11 // pred_check
          %p312 = pneg %p229
        $region26: #{tpu_custom_call.1} parent=11 // pred_check_branch
          %314 = sbr.rel (%p312) target = $region28
        $region27: #{tpu_custom_call.1} parent=11 // pred_region
          _
        $region28: #{tpu_custom_call.1} parent=11 // pred_fallthru
          _
      $region12: #{tpu_custom_call.1} parent=5 // pred_fallthru
        _
      %p315 = scmp.lt.s32.totalorder %s22, 2
      // Predicated region
      $region29: #{tpu_custom_call.1} parent=5 // pred_check
        %p316 = pneg %p315
      $region30: #{tpu_custom_call.1} parent=5 // pred_check_branch
        %318 = sbr.rel (%p316) target = $region32
      $region31: #{tpu_custom_call.1} parent=5 // pred_region
        // Predicated region
        $region33: #{tpu_custom_call.1} parent=31 // pred_check
          %p319 = pneg %p56
        $region34: #{tpu_custom_call.1} parent=31 // pred_check_branch
          %321 = sbr.rel (%p319) target = $region36
        $region35: #{tpu_custom_call.1} parent=31 // pred_region
          %s322 = sand.u32 %s22, 1
          %s323 = scalar_lea.sflag [#allocation4], %s322
          %s324 = sand.u32 %s46, 1
          %s325 = smul.addr %s324, 416
          %s326 = scalar_lea.vmem [#allocation3], %s325
          %s327 = smul.u32 13, %s29
          %s328 = smul.u32 8, %s30
          %s330 = ssub.s32 6656, 6656
          %331 = vsyncadd %s323, %s330
          %s332 = smul.addr %s327, 8
          %s333 = sadd.s32 %s328, %s332
          %s334 = smul.addr %s333, 64
          %s335 = scalar_lea.hbm %s0, %s334
          %s336 = sshll.u32 %s326, 4
          %s337 = int_to_ptr.vmem [resolvable:$true] %s336
          %342 = dma.hbm_to_vmem [thread:$0]  %s335, 6656, %s337, %s323, 512, 512, 32
        $region36: #{tpu_custom_call.1} parent=31 // pred_fallthru
          _
        // Predicated region
        $region37: #{tpu_custom_call.1} parent=31 // pred_check
          %p343 = pneg %p108
        $region38: #{tpu_custom_call.1} parent=31 // pred_check_branch
          %345 = sbr.rel (%p343) target = $region40
        $region39: #{tpu_custom_call.1} parent=31 // pred_region
          %s346 = sand.u32 %s22, 1
          %s347 = scalar_lea.sflag [#allocation4], %s346
          %s348 = sand.u32 %s98, 1
          %s349 = smul.addr %s348, 52
          %s350 = scalar_lea.vmem [#allocation8], %s349
          %s351 = smul.u32 13, %s29
          %s353 = ssub.s32 832, 832
          %354 = vsyncadd %s347, %s353
          %s355 = smul.addr %s351, 64
          %s356 = scalar_lea.hbm %s2, %s355
          %s357 = sshll.u32 %s350, 4
          %s358 = int_to_ptr.vmem [resolvable:$true] %s357
          %363 = dma.hbm_to_vmem [thread:$0]  %s356, 832, %s358, %s347, 64, 64, 4
        $region40: #{tpu_custom_call.1} parent=31 // pred_fallthru
          _
        // Predicated region
        $region41: #{tpu_custom_call.1} parent=31 // pred_check
          %p364 = pneg %p134
        $region42: #{tpu_custom_call.1} parent=31 // pred_check_branch
          %366 = sbr.rel (%p364) target = $region44
        $region43: #{tpu_custom_call.1} parent=31 // pred_region
          %s367 = smul.u32 13, %s29
          %p368 = scmp.lt.s32.totalorder %s367, 25
          %s369 = scalar_select %p368, %s367, 25
          %s370 = smul.addr %s369, 8
          %s371 = scalar_lea.vmem %s3, %s370
          %s372 = smul.u32 13, %s29
        $region44: #{tpu_custom_call.1} parent=31 // pred_fallthru
          _
        // Predicated region
        $region45: #{tpu_custom_call.1} parent=31 // pred_check
          %p373 = pneg %p160
        $region46: #{tpu_custom_call.1} parent=31 // pred_check_branch
          %375 = sbr.rel (%p373) target = $region48
        $region47: #{tpu_custom_call.1} parent=31 // pred_region
          %s376 = smul.u32 13, %s29
          %p377 = scmp.lt.s32.totalorder %s376, 25
          %s378 = scalar_select %p377, %s376, 25
          %s379 = smul.addr %s378, 8
          %s380 = scalar_lea.vmem %s4, %s379
          %s381 = smul.u32 13, %s29
        $region48: #{tpu_custom_call.1} parent=31 // pred_fallthru
          _
      $region32: #{tpu_custom_call.1} parent=5 // pred_fallthru
        _
      %p382 = scmp.le.s32.totalorder 1, %s22
      %p383 = scmp.lt.s32.totalorder %s22, 3
      %p384 = pnand %p382, %p383
      %p385 = pneg %p384
      // Predicated region
      $region49: #{tpu_custom_call.1} parent=5 // pred_check
        _
      $region50: #{tpu_custom_call.1} parent=5 // pred_check_branch
        %387 = sbr.rel (%p384) target = $region52
      $region51: #{tpu_custom_call.1} parent=5 // pred_region
        %s388 = ssub.s32 %s22, 1
        %s389 = sand.u32 %s27, 1
        %s390 = scalar_lea.sflag [#allocation4], %s389
        %s391 = sand.u32 %s49, 1
        %s392 = smul.addr %s391, 416
        %s393 = scalar_lea.vmem [#allocation3], %s392
        // Predicated region
        $region53: #{tpu_custom_call.1} parent=51 // pred_check
          %p394 = pneg %p62
        $region54: #{tpu_custom_call.1} parent=51 // pred_check_branch
          %396 = sbr.rel (%p394) target = $region56
        $region55: #{tpu_custom_call.1} parent=51 // pred_region
          %397 = dma.done %s390, 6656
        $region56: #{tpu_custom_call.1} parent=51 // pred_fallthru
          _
        // Predicated region
        $region57: #{tpu_custom_call.1} parent=51 // pred_check
          %p398 = pneg %p88
        $region58: #{tpu_custom_call.1} parent=51 // pred_check_branch
          %400 = sbr.rel (%p398) target = $region60
        $region59: #{tpu_custom_call.1} parent=51 // pred_region
          %401 = dma.done [#allocation7], 8192
        $region60: #{tpu_custom_call.1} parent=51 // pred_fallthru
          _
        %s402 = sand.u32 %s27, 1
        %s403 = scalar_lea.sflag [#allocation4], %s402
        %s404 = sand.u32 %s101, 1
        %s405 = smul.addr %s404, 52
        %s406 = scalar_lea.vmem [#allocation8], %s405
        // Predicated region
        $region61: #{tpu_custom_call.1} parent=51 // pred_check
          %p407 = pneg %p114
        $region62: #{tpu_custom_call.1} parent=51 // pred_check_branch
          %409 = sbr.rel (%p407) target = $region64
        $region63: #{tpu_custom_call.1} parent=51 // pred_region
          %410 = dma.done %s403, 832
        $region64: #{tpu_custom_call.1} parent=51 // pred_fallthru
          _
        // Predicated region
        $region65: #{tpu_custom_call.1} parent=51 // pred_check
          %p411 = pneg %p187
        $region66: #{tpu_custom_call.1} parent=51 // pred_check_branch
          %413 = sbr.rel (%p411) target = $region68
        $region67: #{tpu_custom_call.1} parent=51 // pred_region
          %414 = dma.done [#allocation7], 1024
        $region68: #{tpu_custom_call.1} parent=51 // pred_fallthru
          _
        // Predicated region
        $region69: #{tpu_custom_call.1} parent=51 // pred_check
          %p415 = pneg %p208
        $region70: #{tpu_custom_call.1} parent=51 // pred_check_branch
          %417 = sbr.rel (%p415) target = $region72
        $region71: #{tpu_custom_call.1} parent=51 // pred_region
          %418 = dma.done [#allocation11], 1024
        $region72: #{tpu_custom_call.1} parent=51 // pred_fallthru
          _
        %s419 = sand.u32 %s27, 1
        %s420 = scalar_lea.sflag [#allocation4], %s419
        %s421 = sand.u32 %s49, 1
        %s422 = smul.addr %s421, 416
        %s423 = scalar_lea.vmem [#allocation3], %s422
        %p424 = pneg %p62
        %p425 = pneg %p59
        %p426 = pneg %p88
        %p427 = pneg %p85
        %s428 = sand.u32 %s27, 1
        %s429 = scalar_lea.sflag [#allocation4], %s428
        %s430 = sand.u32 %s101, 1
        %s431 = smul.addr %s430, 52
        %s432 = scalar_lea.vmem [#allocation8], %s431
        %p433 = pneg %p114
        %p434 = pneg %p111
        %s435 = smul.u32 13, %s31
        %p436 = scmp.lt.s32.totalorder %s435, 25
        %s437 = scalar_select %p436, %s435, 25
        %s438 = smul.addr %s437, 8
        %s439 = scalar_lea.vmem %s3, %s438
        %p440 = pneg %p140
        %p441 = pneg %p137
        %s442 = smul.u32 13, %s31
        %p443 = scmp.lt.s32.totalorder %s442, 25
        %s444 = scalar_select %p443, %s442, 25
        %s445 = smul.addr %s444, 8
        %s446 = scalar_lea.vmem %s4, %s445
        %p447 = pneg %p166
        %p448 = pneg %p163
        %p449 = pneg %p187
        %p450 = pneg %p184
        %p451 = pneg %p208
        %p452 = pneg %p205
        %p453 = pneg %p229
        %p454 = pneg %p226
        %p455 = pneg %p255
        %p456 = pneg %p252
        %s457 = sand.u32 %s242, 1
        %s458 = scalar_lea.sflag [#allocation5], %s457
        %s459 = sand.u32 %s242, 1
        %s460 = smul.addr %s459, 104
        %s461 = scalar_lea.vmem [#allocation12], %s460
        %s462 = smul.u32 13, %s31
        %s463 = smul.u32 8, %s32
        %s464 = smul.u32 128, %s32
        %s465 = smul.u32 13, %s31
        %s466 = smul.u32 13, %s31
        %p467 = scmp.lt.s32.totalorder %s466, 25
        %s468 = scalar_select %p467, %s466, 25
        %s469 = smul.addr %s468, 8
        %s470 = scalar_lea.vmem %s3, %s469
        %s471 = smul.u32 13, %s31
        %s472 = smul.u32 13, %s31
        %p473 = scmp.lt.s32.totalorder %s472, 25
        %s474 = scalar_select %p473, %s472, 25
        %s475 = smul.addr %s474, 8
        %s476 = scalar_lea.vmem %s4, %s475
        %s477 = smul.u32 13, %s31
        %s478 = smul.u32 13, %s31
        %p480 = scmp.eq.s32.totalorder %s32, 0
        // Predicated region
        $region73: #{tpu_custom_call.1} parent=51 // pred_check
          %p481 = pneg %p480
        $region74: #{tpu_custom_call.1} parent=51 // pred_check_branch
          %483 = sbr.rel (%p481) target = $region76
        $region75: #{tpu_custom_call.1} parent=51 // pred_region
          %484 = vst [vmem:[#allocation2] sm:$0xff] 0.0
          %485 = vst [vmem:[#allocation2 + $0x8] sm:$0xff] 0.0
          %486 = vst [vmem:[#allocation2 + $0x10] sm:$0xff] 0.0
          %487 = vst [vmem:[#allocation2 + $0x18] sm:$0xff] 0.0
          %488 = vst [vmem:[#allocation2 + $0x20] sm:$0xff] 0.0
          %489 = vst [vmem:[#allocation2 + $0x28] sm:$0xff] 0.0
          %490 = vst [vmem:[#allocation2 + $0x30] sm:$0xff] 0.0
          %491 = vst [vmem:[#allocation2 + $0x38] sm:$0xff] 0.0
          %492 = vst [vmem:[#allocation2 + $0x40] sm:$0xff] 0.0
          %493 = vst [vmem:[#allocation2 + $0x48] sm:$0xff] 0.0
          %494 = vst [vmem:[#allocation2 + $0x50] sm:$0xff] 0.0
          %495 = vst [vmem:[#allocation2 + $0x58] sm:$0xff] 0.0
          %496 = vst [vmem:[#allocation2 + $0x60] sm:$0xff] 0.0
        $region76: #{tpu_custom_call.1} parent=51 // pred_fallthru
          _
        %v497 = vld [vmem:[#allocation2] sm:$0xff]
        %v498 = vld [vmem:[#allocation2 + $0x8] sm:$0xff]
        %v499 = vld [vmem:[#allocation2 + $0x10] sm:$0xff]
        %v500 = vld [vmem:[#allocation2 + $0x18] sm:$0xff]
        %v501 = vld [vmem:[#allocation2 + $0x20] sm:$0xff]
        %v502 = vld [vmem:[#allocation2 + $0x28] sm:$0xff]
        %v503 = vld [vmem:[#allocation2 + $0x30] sm:$0xff]
        %v504 = vld [vmem:[#allocation2 + $0x38] sm:$0xff]
        %v505 = vld [vmem:[#allocation2 + $0x40] sm:$0xff]
        %v506 = vld [vmem:[#allocation2 + $0x48] sm:$0xff]
        %v507 = vld [vmem:[#allocation2 + $0x50] sm:$0xff]
        %v508 = vld [vmem:[#allocation2 + $0x58] sm:$0xff]
        %v509 = vld [vmem:[#allocation2 + $0x60] sm:$0xff]
        %v510 = vld [vmem:[%s393] sm:$0xff]
        %v511 = vld [vmem:[%s393 + $0x8] sm:$0xff]
        %v512 = vld [vmem:[%s393 + $0x10] sm:$0xff]
        %v513 = vld [vmem:[%s393 + $0x18] sm:$0xff]
        %v514 = vld [vmem:[%s393 + $0x20] sm:$0xff]
        %v515 = vld [vmem:[%s393 + $0x28] sm:$0xff]
        %v516 = vld [vmem:[%s393 + $0x30] sm:$0xff]
        %v517 = vld [vmem:[%s393 + $0x38] sm:$0xff]
        %v518 = vld [vmem:[%s393 + $0x40] sm:$0xff]
        %v519 = vld [vmem:[%s393 + $0x48] sm:$0xff]
        %v520 = vld [vmem:[%s393 + $0x50] sm:$0xff]
        %v521 = vld [vmem:[%s393 + $0x58] sm:$0xff]
        %v522 = vld [vmem:[%s393 + $0x60] sm:$0xff]
        %v523 = vld [vmem:[%s393 + $0x68] sm:$0xff]
        %v524 = vld [vmem:[%s393 + $0x70] sm:$0xff]
        %v525 = vld [vmem:[%s393 + $0x78] sm:$0xff]
        %v526 = vld [vmem:[%s393 + $0x80] sm:$0xff]
        %v527 = vld [vmem:[%s393 + $0x88] sm:$0xff]
        %v528 = vld [vmem:[%s393 + $0x90] sm:$0xff]
        %v529 = vld [vmem:[%s393 + $0x98] sm:$0xff]
        %v530 = vld [vmem:[%s393 + $0xa0] sm:$0xff]
        %v531 = vld [vmem:[%s393 + $0xa8] sm:$0xff]
        %v532 = vld [vmem:[%s393 + $0xb0] sm:$0xff]
        %v533 = vld [vmem:[%s393 + $0xb8] sm:$0xff]
        %v534 = vld [vmem:[%s393 + $0xc0] sm:$0xff]
        %v535 = vld [vmem:[%s393 + $0xc8] sm:$0xff]
        %v536 = vld [vmem:[%s393 + $0xd0] sm:$0xff]
        %v537 = vld [vmem:[%s393 + $0xd8] sm:$0xff]
        %v538 = vld [vmem:[%s393 + $0xe0] sm:$0xff]
        %v539 = vld [vmem:[%s393 + $0xe8] sm:$0xff]
        %v540 = vld [vmem:[%s393 + $0xf0] sm:$0xff]
        %v541 = vld [vmem:[%s393 + $0xf8] sm:$0xff]
        %v542 = vld [vmem:[%s393 + $0x100] sm:$0xff]
        %v543 = vld [vmem:[%s393 + $0x108] sm:$0xff]
        %v544 = vld [vmem:[%s393 + $0x110] sm:$0xff]
        %v545 = vld [vmem:[%s393 + $0x118] sm:$0xff]
        %v546 = vld [vmem:[%s393 + $0x120] sm:$0xff]
        %v547 = vld [vmem:[%s393 + $0x128] sm:$0xff]
        %v548 = vld [vmem:[%s393 + $0x130] sm:$0xff]
        %v549 = vld [vmem:[%s393 + $0x138] sm:$0xff]
        %v550 = vld [vmem:[%s393 + $0x140] sm:$0xff]
        %v551 = vld [vmem:[%s393 + $0x148] sm:$0xff]
        %v552 = vld [vmem:[%s393 + $0x150] sm:$0xff]
        %v553 = vld [vmem:[%s393 + $0x158] sm:$0xff]
        %v554 = vld [vmem:[%s393 + $0x160] sm:$0xff]
        %v555 = vld [vmem:[%s393 + $0x168] sm:$0xff]
        %v556 = vld [vmem:[%s393 + $0x170] sm:$0xff]
        %v557 = vld [vmem:[%s393 + $0x178] sm:$0xff]
        %v558 = vld [vmem:[%s393 + $0x180] sm:$0xff]
        %v559 = vld [vmem:[%s393 + $0x188] sm:$0xff]
        %v560 = vld [vmem:[%s393 + $0x190] sm:$0xff]
        %v561 = vld [vmem:[%s393 + $0x198] sm:$0xff]
        %v562 = vld [vmem:[#allocation6] sm:$0xf]
        %v563 = vld [vmem:[#allocation6 + $0x4] sm:$0xf]
        %v564 = vld [vmem:[#allocation6 + $0x8] sm:$0xf]
        %v565 = vld [vmem:[#allocation6 + $0xc] sm:$0xf]
        %v566 = vld [vmem:[#allocation6 + $0x10] sm:$0xf]
        %v567 = vld [vmem:[#allocation6 + $0x14] sm:$0xf]
        %v568 = vld [vmem:[#allocation6 + $0x18] sm:$0xf]
        %v569 = vld [vmem:[#allocation6 + $0x1c] sm:$0xf]
        %v570 = vld [vmem:[#allocation6 + $0x20] sm:$0xf]
        %v571 = vld [vmem:[#allocation6 + $0x24] sm:$0xf]
        %v572 = vld [vmem:[#allocation6 + $0x28] sm:$0xf]
        %v573 = vld [vmem:[#allocation6 + $0x2c] sm:$0xf]
        %v574 = vld [vmem:[#allocation6 + $0x30] sm:$0xf]
        %v575 = vld [vmem:[#allocation6 + $0x34] sm:$0xf]
        %v576 = vld [vmem:[#allocation6 + $0x38] sm:$0xf]
        %v577 = vld [vmem:[#allocation6 + $0x3c] sm:$0xf]
        %v578 = vld [vmem:[#allocation6 + $0x40] sm:$0xf]
        %v579 = vld [vmem:[#allocation6 + $0x44] sm:$0xf]
        %v580 = vld [vmem:[#allocation6 + $0x48] sm:$0xf]
        %v581 = vld [vmem:[#allocation6 + $0x4c] sm:$0xf]
        %v582 = vld [vmem:[#allocation6 + $0x50] sm:$0xf]
        %v583 = vld [vmem:[#allocation6 + $0x54] sm:$0xf]
        %v584 = vld [vmem:[#allocation6 + $0x58] sm:$0xf]
        %v585 = vld [vmem:[#allocation6 + $0x5c] sm:$0xf]
        %v586 = vld [vmem:[#allocation6 + $0x60] sm:$0xf]
        %v587 = vld [vmem:[#allocation6 + $0x64] sm:$0xf]
        %v588 = vld [vmem:[#allocation6 + $0x68] sm:$0xf]
        %v589 = vld [vmem:[#allocation6 + $0x6c] sm:$0xf]
        %v590 = vld [vmem:[#allocation6 + $0x70] sm:$0xf]
        %v591 = vld [vmem:[#allocation6 + $0x74] sm:$0xf]
        %v592 = vld [vmem:[#allocation6 + $0x78] sm:$0xf]
        %v593 = vld [vmem:[#allocation6 + $0x7c] sm:$0xf]
        %v594 = vld [vmem:[#allocation6 + $0x80] sm:$0xf]
        %v595 = vld [vmem:[#allocation6 + $0x84] sm:$0xf]
        %v596 = vld [vmem:[#allocation6 + $0x88] sm:$0xf]
        %v597 = vld [vmem:[#allocation6 + $0x8c] sm:$0xf]
        %v598 = vld [vmem:[#allocation6 + $0x90] sm:$0xf]
        %v599 = vld [vmem:[#allocation6 + $0x94] sm:$0xf]
        %v600 = vld [vmem:[#allocation6 + $0x98] sm:$0xf]
        %v601 = vld [vmem:[#allocation6 + $0x9c] sm:$0xf]
        %v602 = vld [vmem:[#allocation6 + $0xa0] sm:$0xf]
        %v603 = vld [vmem:[#allocation6 + $0xa4] sm:$0xf]
        %v604 = vld [vmem:[#allocation6 + $0xa8] sm:$0xf]
        %v605 = vld [vmem:[#allocation6 + $0xac] sm:$0xf]
        %v606 = vld [vmem:[#allocation6 + $0xb0] sm:$0xf]
        %v607 = vld [vmem:[#allocation6 + $0xb4] sm:$0xf]
        %v608 = vld [vmem:[#allocation6 + $0xb8] sm:$0xf]
        %v609 = vld [vmem:[#allocation6 + $0xbc] sm:$0xf]
        %v610 = vld [vmem:[#allocation6 + $0xc0] sm:$0xf]
        %v611 = vld [vmem:[#allocation6 + $0xc4] sm:$0xf]
        %v612 = vld [vmem:[#allocation6 + $0xc8] sm:$0xf]
        %v613 = vld [vmem:[#allocation6 + $0xcc] sm:$0xf]
        %v614 = vld [vmem:[#allocation6 + $0xd0] sm:$0xf]
        %v615 = vld [vmem:[#allocation6 + $0xd4] sm:$0xf]
        %v616 = vld [vmem:[#allocation6 + $0xd8] sm:$0xf]
        %v617 = vld [vmem:[#allocation6 + $0xdc] sm:$0xf]
        %v618 = vld [vmem:[#allocation6 + $0xe0] sm:$0xf]
        %v619 = vld [vmem:[#allocation6 + $0xe4] sm:$0xf]
        %v620 = vld [vmem:[#allocation6 + $0xe8] sm:$0xf]
        %v621 = vld [vmem:[#allocation6 + $0xec] sm:$0xf]
        %v622 = vld [vmem:[#allocation6 + $0xf0] sm:$0xf]
        %v623 = vld [vmem:[#allocation6 + $0xf4] sm:$0xf]
        %v624 = vld [vmem:[#allocation6 + $0xf8] sm:$0xf]
        %v625 = vld [vmem:[#allocation6 + $0xfc] sm:$0xf]
        %v626 = vld [vmem:[#allocation6 + $0x100] sm:$0xf]
        %v627 = vld [vmem:[#allocation6 + $0x104] sm:$0xf]
        %v628 = vld [vmem:[#allocation6 + $0x108] sm:$0xf]
        %v629 = vld [vmem:[#allocation6 + $0x10c] sm:$0xf]
        %v630 = vld [vmem:[#allocation6 + $0x110] sm:$0xf]
        %v631 = vld [vmem:[#allocation6 + $0x114] sm:$0xf]
        %v632 = vld [vmem:[#allocation6 + $0x118] sm:$0xf]
        %v633 = vld [vmem:[#allocation6 + $0x11c] sm:$0xf]
        %v634 = vld [vmem:[#allocation6 + $0x120] sm:$0xf]
        %v635 = vld [vmem:[#allocation6 + $0x124] sm:$0xf]
        %v636 = vld [vmem:[#allocation6 + $0x128] sm:$0xf]
        %v637 = vld [vmem:[#allocation6 + $0x12c] sm:$0xf]
        %v638 = vld [vmem:[#allocation6 + $0x130] sm:$0xf]
        %v639 = vld [vmem:[#allocation6 + $0x134] sm:$0xf]
        %v640 = vld [vmem:[#allocation6 + $0x138] sm:$0xf]
        %v641 = vld [vmem:[#allocation6 + $0x13c] sm:$0xf]
        %v642 = vld [vmem:[#allocation6 + $0x140] sm:$0xf]
        %v643 = vld [vmem:[#allocation6 + $0x144] sm:$0xf]
        %v644 = vld [vmem:[#allocation6 + $0x148] sm:$0xf]
        %v645 = vld [vmem:[#allocation6 + $0x14c] sm:$0xf]
        %v646 = vld [vmem:[#allocation6 + $0x150] sm:$0xf]
        %v647 = vld [vmem:[#allocation6 + $0x154] sm:$0xf]
        %v648 = vld [vmem:[#allocation6 + $0x158] sm:$0xf]
        %v649 = vld [vmem:[#allocation6 + $0x15c] sm:$0xf]
        %v650 = vld [vmem:[#allocation6 + $0x160] sm:$0xf]
        %v651 = vld [vmem:[#allocation6 + $0x164] sm:$0xf]
        %v652 = vld [vmem:[#allocation6 + $0x168] sm:$0xf]
        %v653 = vld [vmem:[#allocation6 + $0x16c] sm:$0xf]
        %v654 = vld [vmem:[#allocation6 + $0x170] sm:$0xf]
        %v655 = vld [vmem:[#allocation6 + $0x174] sm:$0xf]
        %v656 = vld [vmem:[#allocation6 + $0x178] sm:$0xf]
        %v657 = vld [vmem:[#allocation6 + $0x17c] sm:$0xf]
        %v658 = vld [vmem:[#allocation6 + $0x180] sm:$0xf]
        %v659 = vld [vmem:[#allocation6 + $0x184] sm:$0xf]
        %v660 = vld [vmem:[#allocation6 + $0x188] sm:$0xf]
        %v661 = vld [vmem:[#allocation6 + $0x18c] sm:$0xf]
        %v662 = vld [vmem:[#allocation6 + $0x190] sm:$0xf]
        %v663 = vld [vmem:[#allocation6 + $0x194] sm:$0xf]
        %v664 = vld [vmem:[#allocation6 + $0x198] sm:$0xf]
        %v665 = vld [vmem:[#allocation6 + $0x19c] sm:$0xf]
        %v666 = vld [vmem:[#allocation6 + $0x1a0] sm:$0xf]
        %v667 = vld [vmem:[#allocation6 + $0x1a4] sm:$0xf]
        %v668 = vld [vmem:[#allocation6 + $0x1a8] sm:$0xf]
        %v669 = vld [vmem:[#allocation6 + $0x1ac] sm:$0xf]
        %v670 = vld [vmem:[#allocation6 + $0x1b0] sm:$0xf]
        %v671 = vld [vmem:[#allocation6 + $0x1b4] sm:$0xf]
        %v672 = vld [vmem:[#allocation6 + $0x1b8] sm:$0xf]
        %v673 = vld [vmem:[#allocation6 + $0x1bc] sm:$0xf]
        %v674 = vld [vmem:[#allocation6 + $0x1c0] sm:$0xf]
        %v675 = vld [vmem:[#allocation6 + $0x1c4] sm:$0xf]
        %v676 = vld [vmem:[#allocation6 + $0x1c8] sm:$0xf]
        %v677 = vld [vmem:[#allocation6 + $0x1cc] sm:$0xf]
        %v678 = vld [vmem:[#allocation6 + $0x1d0] sm:$0xf]
        %v679 = vld [vmem:[#allocation6 + $0x1d4] sm:$0xf]
        %v680 = vld [vmem:[#allocation6 + $0x1d8] sm:$0xf]
        %v681 = vld [vmem:[#allocation6 + $0x1dc] sm:$0xf]
        %v682 = vld [vmem:[#allocation6 + $0x1e0] sm:$0xf]
        %v683 = vld [vmem:[#allocation6 + $0x1e4] sm:$0xf]
        %v684 = vld [vmem:[#allocation6 + $0x1e8] sm:$0xf]
        %v685 = vld [vmem:[#allocation6 + $0x1ec] sm:$0xf]
        %v686 = vld [vmem:[#allocation6 + $0x1f0] sm:$0xf]
        %v687 = vld [vmem:[#allocation6 + $0x1f4] sm:$0xf]
        %v688 = vld [vmem:[#allocation6 + $0x1f8] sm:$0xf]
        %v689 = vld [vmem:[#allocation6 + $0x1fc] sm:$0xf]
        %v742 = vunpack.c.l.b16 %v510
        %v743 = vunpack.c.h.b16 %v510
        %v744 = vunpack.c.l.b16 %v511
        %v745 = vunpack.c.h.b16 %v511
        %v746 = vunpack.c.l.b16 %v512
        %v747 = vunpack.c.h.b16 %v512
        %v748 = vunpack.c.l.b16 %v513
        %v749 = vunpack.c.h.b16 %v513
        %v750 = vunpack.c.l.b16 %v514
        %v751 = vunpack.c.h.b16 %v514
        %v752 = vunpack.c.l.b16 %v515
        %v753 = vunpack.c.h.b16 %v515
        %v754 = vunpack.c.l.b16 %v516
        %v755 = vunpack.c.h.b16 %v516
        %v756 = vunpack.c.l.b16 %v517
        %v757 = vunpack.c.h.b16 %v517
        %v758 = vunpack.c.l.b16 %v518
        %v759 = vunpack.c.h.b16 %v518
        %v760 = vunpack.c.l.b16 %v519
        %v761 = vunpack.c.h.b16 %v519
        %v762 = vunpack.c.l.b16 %v520
        %v763 = vunpack.c.h.b16 %v520
        %v764 = vunpack.c.l.b16 %v521
        %v765 = vunpack.c.h.b16 %v521
        %v766 = vunpack.c.l.b16 %v522
        %v767 = vunpack.c.h.b16 %v522
        %v768 = vunpack.c.l.b16 %v523
        %v769 = vunpack.c.h.b16 %v523
        %v770 = vunpack.c.l.b16 %v524
        %v771 = vunpack.c.h.b16 %v524
        %v772 = vunpack.c.l.b16 %v525
        %v773 = vunpack.c.h.b16 %v525
        %v774 = vunpack.c.l.b16 %v526
        %v775 = vunpack.c.h.b16 %v526
        %v776 = vunpack.c.l.b16 %v527
        %v777 = vunpack.c.h.b16 %v527
        %v778 = vunpack.c.l.b16 %v528
        %v779 = vunpack.c.h.b16 %v528
        %v780 = vunpack.c.l.b16 %v529
        %v781 = vunpack.c.h.b16 %v529
        %v782 = vunpack.c.l.b16 %v530
        %v783 = vunpack.c.h.b16 %v530
        %v784 = vunpack.c.l.b16 %v531
        %v785 = vunpack.c.h.b16 %v531
        %v786 = vunpack.c.l.b16 %v532
        %v787 = vunpack.c.h.b16 %v532
        %v788 = vunpack.c.l.b16 %v533
        %v789 = vunpack.c.h.b16 %v533
        %v790 = vunpack.c.l.b16 %v534
        %v791 = vunpack.c.h.b16 %v534
        %v792 = vunpack.c.l.b16 %v535
        %v793 = vunpack.c.h.b16 %v535
        %v794 = vunpack.c.l.b16 %v536
        %v795 = vunpack.c.h.b16 %v536
        %v796 = vunpack.c.l.b16 %v537
        %v797 = vunpack.c.h.b16 %v537
        %v798 = vunpack.c.l.b16 %v538
        %v799 = vunpack.c.h.b16 %v538
        %v800 = vunpack.c.l.b16 %v539
        %v801 = vunpack.c.h.b16 %v539
        %v802 = vunpack.c.l.b16 %v540
        %v803 = vunpack.c.h.b16 %v540
        %v804 = vunpack.c.l.b16 %v541
        %v805 = vunpack.c.h.b16 %v541
        %v806 = vunpack.c.l.b16 %v542
        %v807 = vunpack.c.h.b16 %v542
        %v808 = vunpack.c.l.b16 %v543
        %v809 = vunpack.c.h.b16 %v543
        %v810 = vunpack.c.l.b16 %v544
        %v811 = vunpack.c.h.b16 %v544
        %v812 = vunpack.c.l.b16 %v545
        %v813 = vunpack.c.h.b16 %v545
        %v814 = vunpack.c.l.b16 %v546
        %v815 = vunpack.c.h.b16 %v546
        %v816 = vunpack.c.l.b16 %v547
        %v817 = vunpack.c.h.b16 %v547
        %v818 = vunpack.c.l.b16 %v548
        %v819 = vunpack.c.h.b16 %v548
        %v820 = vunpack.c.l.b16 %v549
        %v821 = vunpack.c.h.b16 %v549
        %v822 = vunpack.c.l.b16 %v550
        %v823 = vunpack.c.h.b16 %v550
        %v824 = vunpack.c.l.b16 %v551
        %v825 = vunpack.c.h.b16 %v551
        %v826 = vunpack.c.l.b16 %v552
        %v827 = vunpack.c.h.b16 %v552
        %v828 = vunpack.c.l.b16 %v553
        %v829 = vunpack.c.h.b16 %v553
        %v830 = vunpack.c.l.b16 %v554
        %v831 = vunpack.c.h.b16 %v554
        %v832 = vunpack.c.l.b16 %v555
        %v833 = vunpack.c.h.b16 %v555
        %v834 = vunpack.c.l.b16 %v556
        %v835 = vunpack.c.h.b16 %v556
        %v836 = vunpack.c.l.b16 %v557
        %v837 = vunpack.c.h.b16 %v557
        %v838 = vunpack.c.l.b16 %v558
        %v839 = vunpack.c.h.b16 %v558
        %v840 = vunpack.c.l.b16 %v559
        %v841 = vunpack.c.h.b16 %v559
        %v842 = vunpack.c.l.b16 %v560
        %v843 = vunpack.c.h.b16 %v560
        %v844 = vunpack.c.l.b16 %v561
        %v845 = vunpack.c.h.b16 %v561
        %v846 = vpack.c.b16 %v750, %v742
        %v847 = vpack.c.b16 %v751, %v743
        %v848 = vpack.c.b16 %v752, %v744
        %v849 = vpack.c.b16 %v753, %v745
        %v850 = vpack.c.b16 %v754, %v746
        %v851 = vpack.c.b16 %v755, %v747
        %v852 = vpack.c.b16 %v756, %v748
        %v853 = vpack.c.b16 %v757, %v749
        %v854 = vpack.c.b16 %v766, %v758
        %v855 = vpack.c.b16 %v767, %v759
        %v856 = vpack.c.b16 %v768, %v760
        %v857 = vpack.c.b16 %v769, %v761
        %v858 = vpack.c.b16 %v770, %v762
        %v859 = vpack.c.b16 %v771, %v763
        %v860 = vpack.c.b16 %v772, %v764
        %v861 = vpack.c.b16 %v773, %v765
        %v862 = vpack.c.b16 %v782, %v774
        %v863 = vpack.c.b16 %v783, %v775
        %v864 = vpack.c.b16 %v784, %v776
        %v865 = vpack.c.b16 %v785, %v777
        %v866 = vpack.c.b16 %v786, %v778
        %v867 = vpack.c.b16 %v787, %v779
        %v868 = vpack.c.b16 %v788, %v780
        %v869 = vpack.c.b16 %v789, %v781
        %v870 = vpack.c.b16 %v798, %v790
        %v871 = vpack.c.b16 %v799, %v791
        %v872 = vpack.c.b16 %v800, %v792
        %v873 = vpack.c.b16 %v801, %v793
        %v874 = vpack.c.b16 %v802, %v794
        %v875 = vpack.c.b16 %v803, %v795
        %v876 = vpack.c.b16 %v804, %v796
        %v877 = vpack.c.b16 %v805, %v797
        %v878 = vpack.c.b16 %v814, %v806
        %v879 = vpack.c.b16 %v815, %v807
        %v880 = vpack.c.b16 %v816, %v808
        %v881 = vpack.c.b16 %v817, %v809
        %v882 = vpack.c.b16 %v818, %v810
        %v883 = vpack.c.b16 %v819, %v811
        %v884 = vpack.c.b16 %v820, %v812
        %v885 = vpack.c.b16 %v821, %v813
        %v886 = vpack.c.b16 %v830, %v822
        %v887 = vpack.c.b16 %v831, %v823
        %v888 = vpack.c.b16 %v832, %v824
        %v889 = vpack.c.b16 %v833, %v825
        %v890 = vpack.c.b16 %v834, %v826
        %v891 = vpack.c.b16 %v835, %v827
        %v892 = vpack.c.b16 %v836, %v828
        %v893 = vpack.c.b16 %v837, %v829
        %v894 = vpack.c.b16 %v838, %v838
        %v895 = vpack.c.b16 %v839, %v839
        %v896 = vpack.c.b16 %v840, %v840
        %v897 = vpack.c.b16 %v841, %v841
        %v898 = vpack.c.b16 %v842, %v842
        %v899 = vpack.c.b16 %v843, %v843
        %v900 = vpack.c.b16 %v844, %v844
        %v901 = vpack.c.b16 %v845, %v845
        %v1086 = vunpack.c.l.b16 %v562
        %v1087 = vunpack.c.l.b16 %v563
        %v1088 = vunpack.c.l.b16 %v564
        %v1089 = vunpack.c.l.b16 %v565
        %v1090 = vunpack.c.l.b16 %v566
        %v1091 = vunpack.c.l.b16 %v567
        %v1092 = vunpack.c.l.b16 %v568
        %v1093 = vunpack.c.l.b16 %v569
        %v1094 = vunpack.c.l.b16 %v570
        %v1095 = vunpack.c.l.b16 %v571
        %v1096 = vunpack.c.l.b16 %v572
        %v1097 = vunpack.c.l.b16 %v573
        %v1098 = vunpack.c.l.b16 %v574
        %v1099 = vunpack.c.l.b16 %v575
        %v1100 = vunpack.c.l.b16 %v576
        %v1101 = vunpack.c.l.b16 %v577
        %v1102 = vunpack.c.l.b16 %v578
        %v1103 = vunpack.c.l.b16 %v579
        %v1104 = vunpack.c.l.b16 %v580
        %v1105 = vunpack.c.l.b16 %v581
        %v1106 = vunpack.c.l.b16 %v582
        %v1107 = vunpack.c.l.b16 %v583
        %v1108 = vunpack.c.l.b16 %v584
        %v1109 = vunpack.c.l.b16 %v585
        %v1110 = vunpack.c.l.b16 %v586
        %v1111 = vunpack.c.l.b16 %v587
        %v1112 = vunpack.c.l.b16 %v588
        %v1113 = vunpack.c.l.b16 %v589
        %v1114 = vunpack.c.l.b16 %v590
        %v1115 = vunpack.c.l.b16 %v591
        %v1116 = vunpack.c.l.b16 %v592
        %v1117 = vunpack.c.l.b16 %v593
        %v1118 = vunpack.c.l.b16 %v594
        %v1119 = vunpack.c.l.b16 %v595
        %v1120 = vunpack.c.l.b16 %v596
        %v1121 = vunpack.c.l.b16 %v597
        %v1122 = vunpack.c.l.b16 %v598
        %v1123 = vunpack.c.l.b16 %v599
        %v1124 = vunpack.c.l.b16 %v600
        %v1125 = vunpack.c.l.b16 %v601
        %v1126 = vunpack.c.l.b16 %v602
        %v1127 = vunpack.c.l.b16 %v603
        %v1128 = vunpack.c.l.b16 %v604
        %v1129 = vunpack.c.l.b16 %v605
        %v1130 = vunpack.c.l.b16 %v606
        %v1131 = vunpack.c.l.b16 %v607
        %v1132 = vunpack.c.l.b16 %v608
        %v1133 = vunpack.c.l.b16 %v609
        %v1134 = vunpack.c.l.b16 %v610
        %v1135 = vunpack.c.l.b16 %v611
        %v1136 = vunpack.c.l.b16 %v612
        %v1137 = vunpack.c.l.b16 %v613
        %v1138 = vunpack.c.l.b16 %v614
        %v1139 = vunpack.c.l.b16 %v615
        %v1140 = vunpack.c.l.b16 %v616
        %v1141 = vunpack.c.l.b16 %v617
        %v1142 = vunpack.c.l.b16 %v618
        %v1143 = vunpack.c.l.b16 %v619
        %v1144 = vunpack.c.l.b16 %v620
        %v1145 = vunpack.c.l.b16 %v621
        %v1146 = vunpack.c.l.b16 %v622
        %v1147 = vunpack.c.l.b16 %v623
        %v1148 = vunpack.c.l.b16 %v624
        %v1149 = vunpack.c.l.b16 %v625
        %v1150 = vunpack.c.l.b16 %v626
        %v1151 = vunpack.c.l.b16 %v627
        %v1152 = vunpack.c.l.b16 %v628
        %v1153 = vunpack.c.l.b16 %v629
        %v1154 = vunpack.c.l.b16 %v630
        %v1155 = vunpack.c.l.b16 %v631
        %v1156 = vunpack.c.l.b16 %v632
        %v1157 = vunpack.c.l.b16 %v633
        %v1158 = vunpack.c.l.b16 %v634
        %v1159 = vunpack.c.l.b16 %v635
        %v1160 = vunpack.c.l.b16 %v636
        %v1161 = vunpack.c.l.b16 %v637
        %v1162 = vunpack.c.l.b16 %v638
        %v1163 = vunpack.c.l.b16 %v639
        %v1164 = vunpack.c.l.b16 %v640
        %v1165 = vunpack.c.l.b16 %v641
        %v1166 = vunpack.c.l.b16 %v642
        %v1167 = vunpack.c.l.b16 %v643
        %v1168 = vunpack.c.l.b16 %v644
        %v1169 = vunpack.c.l.b16 %v645
        %v1170 = vunpack.c.l.b16 %v646
        %v1171 = vunpack.c.l.b16 %v647
        %v1172 = vunpack.c.l.b16 %v648
        %v1173 = vunpack.c.l.b16 %v649
        %v1174 = vunpack.c.l.b16 %v650
        %v1175 = vunpack.c.l.b16 %v651
        %v1176 = vunpack.c.l.b16 %v652
        %v1177 = vunpack.c.l.b16 %v653
        %v1178 = vunpack.c.l.b16 %v654
        %v1179 = vunpack.c.l.b16 %v655
        %v1180 = vunpack.c.l.b16 %v656
        %v1181 = vunpack.c.l.b16 %v657
        %v1182 = vunpack.c.l.b16 %v658
        %v1183 = vunpack.c.l.b16 %v659
        %v1184 = vunpack.c.l.b16 %v660
        %v1185 = vunpack.c.l.b16 %v661
        %v1186 = vunpack.c.l.b16 %v662
        %v1187 = vunpack.c.l.b16 %v663
        %v1188 = vunpack.c.l.b16 %v664
        %v1189 = vunpack.c.l.b16 %v665
        %v1190 = vunpack.c.l.b16 %v666
        %v1191 = vunpack.c.l.b16 %v667
        %v1192 = vunpack.c.l.b16 %v668
        %v1193 = vunpack.c.l.b16 %v669
        %v1194 = vunpack.c.l.b16 %v670
        %v1195 = vunpack.c.l.b16 %v671
        %v1196 = vunpack.c.l.b16 %v672
        %v1197 = vunpack.c.l.b16 %v673
        %v1198 = vunpack.c.l.b16 %v674
        %v1199 = vunpack.c.l.b16 %v675
        %v1200 = vunpack.c.l.b16 %v676
        %v1201 = vunpack.c.l.b16 %v677
        %v1202 = vunpack.c.l.b16 %v678
        %v1203 = vunpack.c.l.b16 %v679
        %v1204 = vunpack.c.l.b16 %v680
        %v1205 = vunpack.c.l.b16 %v681
        %v1206 = vunpack.c.l.b16 %v682
        %v1207 = vunpack.c.l.b16 %v683
        %v1208 = vunpack.c.l.b16 %v684
        %v1209 = vunpack.c.l.b16 %v685
        %v1210 = vunpack.c.l.b16 %v686
        %v1211 = vunpack.c.l.b16 %v687
        %v1212 = vunpack.c.l.b16 %v688
        %v1213 = vunpack.c.l.b16 %v689
        %v1214 = vpack.c.b16 %v1087, %v1086
        %v1215 = vpack.c.b16 %v1089, %v1088
        %v1216 = vpack.c.b16 %v1091, %v1090
        %v1217 = vpack.c.b16 %v1093, %v1092
        %v1218 = vpack.c.b16 %v1095, %v1094
        %v1219 = vpack.c.b16 %v1097, %v1096
        %v1220 = vpack.c.b16 %v1099, %v1098
        %v1221 = vpack.c.b16 %v1101, %v1100
        %v1222 = vpack.c.b16 %v1103, %v1102
        %v1223 = vpack.c.b16 %v1105, %v1104
        %v1224 = vpack.c.b16 %v1107, %v1106
        %v1225 = vpack.c.b16 %v1109, %v1108
        %v1226 = vpack.c.b16 %v1111, %v1110
        %v1227 = vpack.c.b16 %v1113, %v1112
        %v1228 = vpack.c.b16 %v1115, %v1114
        %v1229 = vpack.c.b16 %v1117, %v1116
        %v1230 = vpack.c.b16 %v1119, %v1118
        %v1231 = vpack.c.b16 %v1121, %v1120
        %v1232 = vpack.c.b16 %v1123, %v1122
        %v1233 = vpack.c.b16 %v1125, %v1124
        %v1234 = vpack.c.b16 %v1127, %v1126
        %v1235 = vpack.c.b16 %v1129, %v1128
        %v1236 = vpack.c.b16 %v1131, %v1130
        %v1237 = vpack.c.b16 %v1133, %v1132
        %v1238 = vpack.c.b16 %v1135, %v1134
        %v1239 = vpack.c.b16 %v1137, %v1136
        %v1240 = vpack.c.b16 %v1139, %v1138
        %v1241 = vpack.c.b16 %v1141, %v1140
        %v1242 = vpack.c.b16 %v1143, %v1142
        %v1243 = vpack.c.b16 %v1145, %v1144
        %v1244 = vpack.c.b16 %v1147, %v1146
        %v1245 = vpack.c.b16 %v1149, %v1148
        %v1246 = vpack.c.b16 %v1151, %v1150
        %v1247 = vpack.c.b16 %v1153, %v1152
        %v1248 = vpack.c.b16 %v1155, %v1154
        %v1249 = vpack.c.b16 %v1157, %v1156
        %v1250 = vpack.c.b16 %v1159, %v1158
        %v1251 = vpack.c.b16 %v1161, %v1160
        %v1252 = vpack.c.b16 %v1163, %v1162
        %v1253 = vpack.c.b16 %v1165, %v1164
        %v1254 = vpack.c.b16 %v1167, %v1166
        %v1255 = vpack.c.b16 %v1169, %v1168
        %v1256 = vpack.c.b16 %v1171, %v1170
        %v1257 = vpack.c.b16 %v1173, %v1172
        %v1258 = vpack.c.b16 %v1175, %v1174
        %v1259 = vpack.c.b16 %v1177, %v1176
        %v1260 = vpack.c.b16 %v1179, %v1178
        %v1261 = vpack.c.b16 %v1181, %v1180
        %v1262 = vpack.c.b16 %v1183, %v1182
        %v1263 = vpack.c.b16 %v1185, %v1184
        %v1264 = vpack.c.b16 %v1187, %v1186
        %v1265 = vpack.c.b16 %v1189, %v1188
        %v1266 = vpack.c.b16 %v1191, %v1190
        %v1267 = vpack.c.b16 %v1193, %v1192
        %v1268 = vpack.c.b16 %v1195, %v1194
        %v1269 = vpack.c.b16 %v1197, %v1196
        %v1270 = vpack.c.b16 %v1199, %v1198
        %v1271 = vpack.c.b16 %v1201, %v1200
        %v1272 = vpack.c.b16 %v1203, %v1202
        %v1273 = vpack.c.b16 %v1205, %v1204
        %v1274 = vpack.c.b16 %v1207, %v1206
        %v1275 = vpack.c.b16 %v1209, %v1208
        %v1276 = vpack.c.b16 %v1211, %v1210
        %v1277 = vpack.c.b16 %v1213, %v1212
        %1342 = vmatprep.subr.bf16.mxu0 0
        %1343 = vmatpush1.bf16.msra.mxu0 %v1214
        %1344 = vmatprep.subr.bf16.mxu0 0
        %1345 = vmatpush1.bf16.msra.mxu0 %v1215
        %1346 = vmatprep.subr.bf16.mxu0 0
        %1347 = vmatpush1.bf16.msra.mxu0 %v1216
        %1348 = vmatprep.subr.bf16.mxu0 0
        %1349 = vmatpush1.bf16.msra.mxu0 %v1217
        %1350 = vmatprep.subr.bf16.mxu0 0
        %1351 = vmatpush1.bf16.msra.mxu0 %v1218
        %1352 = vmatprep.subr.bf16.mxu0 0
        %1353 = vmatpush1.bf16.msra.mxu0 %v1219
        %1354 = vmatprep.subr.bf16.mxu0 0
        %1355 = vmatpush1.bf16.msra.mxu0 %v1220
        %1356 = vmatprep.subr.bf16.mxu0 0
        %1357 = vmatpush1.bf16.msra.mxu0 %v1221
        %1358 = vmatprep.subr.bf16.mxu0 0
        %1359 = vmatpush1.bf16.msra.mxu0 %v1222
        %1360 = vmatprep.subr.bf16.mxu0 0
        %1361 = vmatpush1.bf16.msra.mxu0 %v1223
        %1362 = vmatprep.subr.bf16.mxu0 0
        %1363 = vmatpush1.bf16.msra.mxu0 %v1224
        %1364 = vmatprep.subr.bf16.mxu0 0
        %1365 = vmatpush1.bf16.msra.mxu0 %v1225
        %1366 = vmatprep.subr.bf16.mxu0 0
        %1367 = vmatpush1.bf16.msra.mxu0 %v1226
        %1368 = vmatprep.subr.bf16.mxu0 0
        %1369 = vmatpush1.bf16.msra.mxu0 %v1227
        %1370 = vmatprep.subr.bf16.mxu0 0
        %1371 = vmatpush1.bf16.msra.mxu0 %v1228
        %1372 = vmatprep.subr.bf16.mxu0 0
        %1373 = vmatpush1.bf16.msra.mxu0 %v1229
        %1374 = vmatprep.mubr.bf16.mxu0 %v847
        %1375 = vmatmul.mubr.bf16.gmra.mrb[0].mxu0 %v846
        %v1376 = vpop.f32.mrb[0].mxu0
        %v1377 = vadd.f32 0.0, %v1376
        %v1378 = vpop.f32.mrb[0].mxu0
        %v1379 = vpop.f32.mrb[0].mxu0
        %v1380 = vadd.f32 0.0, %v1379
        %v1381 = vpop.f32.mrb[0].mxu0
        %1382 = vmatprep.mubr.bf16.mxu0 %v855
        %1383 = vmatmul.mubr.bf16.gmra.mrb[0].mxu0 %v854
        %v1384 = vpop.f32.mrb[0].mxu0
        %v1385 = vadd.f32 0.0, %v1384
        %v1386 = vpop.f32.mrb[0].mxu0
        %v1387 = vpop.f32.mrb[0].mxu0
        %v1388 = vadd.f32 0.0, %v1387
        %v1389 = vpop.f32.mrb[0].mxu0
        %1390 = vmatprep.mubr.bf16.mxu0 %v863
        %1391 = vmatmul.mubr.bf16.gmra.mrb[0].mxu0 %v862
        %v1392 = vpop.f32.mrb[0].mxu0
        %v1393 = vadd.f32 0.0, %v1392
        %v1394 = vpop.f32.mrb[0].mxu0
        %v1395 = vpop.f32.mrb[0].mxu0
        %v1396 = vadd.f32 0.0, %v1395
        %v1397 = vpop.f32.mrb[0].mxu0
        %1398 = vmatprep.mubr.bf16.mxu0 %v871
        %1399 = vmatmul.mubr.bf16.gmra.mrb[0].mxu0 %v870
        %v1400 = vpop.f32.mrb[0].mxu0
        %v1401 = vadd.f32 0.0, %v1400
        %v1402 = vpop.f32.mrb[0].mxu0
        %v1403 = vpop.f32.mrb[0].mxu0
        %v1404 = vadd.f32 0.0, %v1403
        %v1405 = vpop.f32.mrb[0].mxu0
        %1406 = vmatprep.mubr.bf16.mxu0 %v879
        %1407 = vmatmul.mubr.bf16.gmra.mrb[0].mxu0 %v878
        %v1408 = vpop.f32.mrb[0].mxu0
        %v1409 = vadd.f32 0.0, %v1408
        %v1410 = vpop.f32.mrb[0].mxu0
        %v1411 = vpop.f32.mrb[0].mxu0
        %v1412 = vadd.f32 0.0, %v1411
        %v1413 = vpop.f32.mrb[0].mxu0
        %1414 = vmatprep.mubr.bf16.mxu0 %v887
        %1415 = vmatmul.mubr.bf16.gmra.mrb[0].mxu0 %v886
        %v1416 = vpop.f32.mrb[0].mxu0
        %v1417 = vadd.f32 0.0, %v1416
        %v1418 = vpop.f32.mrb[0].mxu0
        %v1419 = vpop.f32.mrb[0].mxu0
        %v1420 = vadd.f32 0.0, %v1419
        %v1421 = vpop.f32.mrb[0].mxu0
        %1422 = vmatprep.mubr.bf16.mxu0 %v895
        %1423 = vmatmul.mubr.bf16.gmra.mrb[0].mxu0 %v894
        %v1424 = vpop.f32.mrb[0].mxu0
        %v1425 = vadd.f32 0.0, %v1424
        %v1426 = vpop.f32.mrb[0].mxu0
        %v1427 = vpop.f32.mrb[0].mxu0
        %v1428 = vpop.f32.mrb[0].mxu0
        %1429 = vdwg.mxu0
        %1430 = vmatprep.subr.bf16.mxu0 0
        %1431 = vmatpush1.bf16.msra.mxu0 %v1230
        %1432 = vmatprep.subr.bf16.mxu0 0
        %1433 = vmatpush1.bf16.msra.mxu0 %v1231
        %1434 = vmatprep.subr.bf16.mxu0 0
        %1435 = vmatpush1.bf16.msra.mxu0 %v1232
        %1436 = vmatprep.subr.bf16.mxu0 0
        %1437 = vmatpush1.bf16.msra.mxu0 %v1233
        %1438 = vmatprep.subr.bf16.mxu0 0
        %1439 = vmatpush1.bf16.msra.mxu0 %v1234
        %1440 = vmatprep.subr.bf16.mxu0 0
        %1441 = vmatpush1.bf16.msra.mxu0 %v1235
        %1442 = vmatprep.subr.bf16.mxu0 0
        %1443 = vmatpush1.bf16.msra.mxu0 %v1236
        %1444 = vmatprep.subr.bf16.mxu0 0
        %1445 = vmatpush1.bf16.msra.mxu0 %v1237
        %1446 = vmatprep.subr.bf16.mxu0 0
        %1447 = vmatpush1.bf16.msra.mxu0 %v1238
        %1448 = vmatprep.subr.bf16.mxu0 0
        %1449 = vmatpush1.bf16.msra.mxu0 %v1239
        %1450 = vmatprep.subr.bf16.mxu0 0
        %1451 = vmatpush1.bf16.msra.mxu0 %v1240
        %1452 = vmatprep.subr.bf16.mxu0 0
        %1453 = vmatpush1.bf16.msra.mxu0 %v1241
        %1454 = vmatprep.subr.bf16.mxu0 0
        %1455 = vmatpush1.bf16.msra.mxu0 %v1242
        %1456 = vmatprep.subr.bf16.mxu0 0
        %1457 = vmatpush1.bf16.msra.mxu0 %v1243
        %1458 = vmatprep.subr.bf16.mxu0 0
        %1459 = vmatpush1.bf16.msra.mxu0 %v1244
        %1460 = vmatprep.subr.bf16.mxu0 0
        %1461 = vmatpush1.bf16.msra.mxu0 %v1245
        %1462 = vmatprep.mubr.bf16.mxu0 %v849
        %1463 = vmatmul.mubr.bf16.gmra.mrb[0].mxu0 %v848
        %v1464 = vpop.f32.mrb[0].mxu0
        %v1465 = vadd.f32 %v1377, %v1464
        %v1466 = vpop.f32.mrb[0].mxu0
        %v1467 = vpop.f32.mrb[0].mxu0
        %v1468 = vadd.f32 %v1380, %v1467
        %v1469 = vpop.f32.mrb[0].mxu0
        %1470 = vmatprep.mubr.bf16.mxu0 %v857
        %1471 = vmatmul.mubr.bf16.gmra.mrb[0].mxu0 %v856
        %v1472 = vpop.f32.mrb[0].mxu0
        %v1473 = vadd.f32 %v1385, %v1472
        %v1474 = vpop.f32.mrb[0].mxu0
        %v1475 = vpop.f32.mrb[0].mxu0
        %v1476 = vadd.f32 %v1388, %v1475
        %v1477 = vpop.f32.mrb[0].mxu0
        %1478 = vmatprep.mubr.bf16.mxu0 %v865
        %1479 = vmatmul.mubr.bf16.gmra.mrb[0].mxu0 %v864
        %v1480 = vpop.f32.mrb[0].mxu0
        %v1481 = vadd.f32 %v1393, %v1480
        %v1482 = vpop.f32.mrb[0].mxu0
        %v1483 = vpop.f32.mrb[0].mxu0
        %v1484 = vadd.f32 %v1396, %v1483
        %v1485 = vpop.f32.mrb[0].mxu0
        %1486 = vmatprep.mubr.bf16.mxu0 %v873
        %1487 = vmatmul.mubr.bf16.gmra.mrb[0].mxu0 %v872
        %v1488 = vpop.f32.mrb[0].mxu0
        %v1489 = vadd.f32 %v1401, %v1488
        %v1490 = vpop.f32.mrb[0].mxu0
        %v1491 = vpop.f32.mrb[0].mxu0
        %v1492 = vadd.f32 %v1404, %v1491
        %v1493 = vpop.f32.mrb[0].mxu0
        %1494 = vmatprep.mubr.bf16.mxu0 %v881
        %1495 = vmatmul.mubr.bf16.gmra.mrb[0].mxu0 %v880
        %v1496 = vpop.f32.mrb[0].mxu0
        %v1497 = vadd.f32 %v1409, %v1496
        %v1498 = vpop.f32.mrb[0].mxu0
        %v1499 = vpop.f32.mrb[0].mxu0
        %v1500 = vadd.f32 %v1412, %v1499
        %v1501 = vpop.f32.mrb[0].mxu0
        %1502 = vmatprep.mubr.bf16.mxu0 %v889
        %1503 = vmatmul.mubr.bf16.gmra.mrb[0].mxu0 %v888
        %v1504 = vpop.f32.mrb[0].mxu0
        %v1505 = vadd.f32 %v1417, %v1504
        %v1506 = vpop.f32.mrb[0].mxu0
        %v1507 = vpop.f32.mrb[0].mxu0
        %v1508 = vadd.f32 %v1420, %v1507
        %v1509 = vpop.f32.mrb[0].mxu0
        %1510 = vmatprep.mubr.bf16.mxu0 %v897
        %1511 = vmatmul.mubr.bf16.gmra.mrb[0].mxu0 %v896
        %v1512 = vpop.f32.mrb[0].mxu0
        %v1513 = vadd.f32 %v1425, %v1512
        %v1514 = vpop.f32.mrb[0].mxu0
        %v1515 = vpop.f32.mrb[0].mxu0
        %v1516 = vpop.f32.mrb[0].mxu0
        %1517 = vdwg.mxu0
        %1518 = vmatprep.subr.bf16.mxu0 0
        %1519 = vmatpush1.bf16.msra.mxu0 %v1246
        %1520 = vmatprep.subr.bf16.mxu0 0
        %1521 = vmatpush1.bf16.msra.mxu0 %v1247
        %1522 = vmatprep.subr.bf16.mxu0 0
        %1523 = vmatpush1.bf16.msra.mxu0 %v1248
        %1524 = vmatprep.subr.bf16.mxu0 0
        %1525 = vmatpush1.bf16.msra.mxu0 %v1249
        %1526 = vmatprep.subr.bf16.mxu0 0
        %1527 = vmatpush1.bf16.msra.mxu0 %v1250
        %1528 = vmatprep.subr.bf16.mxu0 0
        %1529 = vmatpush1.bf16.msra.mxu0 %v1251
        %1530 = vmatprep.subr.bf16.mxu0 0
        %1531 = vmatpush1.bf16.msra.mxu0 %v1252
        %1532 = vmatprep.subr.bf16.mxu0 0
        %1533 = vmatpush1.bf16.msra.mxu0 %v1253
        %1534 = vmatprep.subr.bf16.mxu0 0
        %1535 = vmatpush1.bf16.msra.mxu0 %v1254
        %1536 = vmatprep.subr.bf16.mxu0 0
        %1537 = vmatpush1.bf16.msra.mxu0 %v1255
        %1538 = vmatprep.subr.bf16.mxu0 0
        %1539 = vmatpush1.bf16.msra.mxu0 %v1256
        %1540 = vmatprep.subr.bf16.mxu0 0
        %1541 = vmatpush1.bf16.msra.mxu0 %v1257
        %1542 = vmatprep.subr.bf16.mxu0 0
        %1543 = vmatpush1.bf16.msra.mxu0 %v1258
        %1544 = vmatprep.subr.bf16.mxu0 0
        %1545 = vmatpush1.bf16.msra.mxu0 %v1259
        %1546 = vmatprep.subr.bf16.mxu0 0
        %1547 = vmatpush1.bf16.msra.mxu0 %v1260
        %1548 = vmatprep.subr.bf16.mxu0 0
        %1549 = vmatpush1.bf16.msra.mxu0 %v1261
        %1550 = vmatprep.mubr.bf16.mxu0 %v851
        %1551 = vmatmul.mubr.bf16.gmra.mrb[0].mxu0 %v850
        %v1552 = vpop.f32.mrb[0].mxu0
        %v1553 = vadd.f32 %v1465, %v1552
        %v1554 = vpop.f32.mrb[0].mxu0
        %v1555 = vpop.f32.mrb[0].mxu0
        %v1556 = vadd.f32 %v1468, %v1555
        %v1557 = vpop.f32.mrb[0].mxu0
        %1558 = vmatprep.mubr.bf16.mxu0 %v859
        %1559 = vmatmul.mubr.bf16.gmra.mrb[0].mxu0 %v858
        %v1560 = vpop.f32.mrb[0].mxu0
        %v1561 = vadd.f32 %v1473, %v1560
        %v1562 = vpop.f32.mrb[0].mxu0
        %v1563 = vpop.f32.mrb[0].mxu0
        %v1564 = vadd.f32 %v1476, %v1563
        %v1565 = vpop.f32.mrb[0].mxu0
        %1566 = vmatprep.mubr.bf16.mxu0 %v867
        %1567 = vmatmul.mubr.bf16.gmra.mrb[0].mxu0 %v866
        %v1568 = vpop.f32.mrb[0].mxu0
        %v1569 = vadd.f32 %v1481, %v1568
        %v1570 = vpop.f32.mrb[0].mxu0
        %v1571 = vpop.f32.mrb[0].mxu0
        %v1572 = vadd.f32 %v1484, %v1571
        %v1573 = vpop.f32.mrb[0].mxu0
        %1574 = vmatprep.mubr.bf16.mxu0 %v875
        %1575 = vmatmul.mubr.bf16.gmra.mrb[0].mxu0 %v874
        %v1576 = vpop.f32.mrb[0].mxu0
        %v1577 = vadd.f32 %v1489, %v1576
        %v1578 = vpop.f32.mrb[0].mxu0
        %v1579 = vpop.f32.mrb[0].mxu0
        %v1580 = vadd.f32 %v1492, %v1579
        %v1581 = vpop.f32.mrb[0].mxu0
        %1582 = vmatprep.mubr.bf16.mxu0 %v883
        %1583 = vmatmul.mubr.bf16.gmra.mrb[0].mxu0 %v882
        %v1584 = vpop.f32.mrb[0].mxu0
        %v1585 = vadd.f32 %v1497, %v1584
        %v1586 = vpop.f32.mrb[0].mxu0
        %v1587 = vpop.f32.mrb[0].mxu0
        %v1588 = vadd.f32 %v1500, %v1587
        %v1589 = vpop.f32.mrb[0].mxu0
        %1590 = vmatprep.mubr.bf16.mxu0 %v891
        %1591 = vmatmul.mubr.bf16.gmra.mrb[0].mxu0 %v890
        %v1592 = vpop.f32.mrb[0].mxu0
        %v1593 = vadd.f32 %v1505, %v1592
        %v1594 = vpop.f32.mrb[0].mxu0
        %v1595 = vpop.f32.mrb[0].mxu0
        %v1596 = vadd.f32 %v1508, %v1595
        %v1597 = vpop.f32.mrb[0].mxu0
        %1598 = vmatprep.mubr.bf16.mxu0 %v899
        %1599 = vmatmul.mubr.bf16.gmra.mrb[0].mxu0 %v898
        %v1600 = vpop.f32.mrb[0].mxu0
        %v1601 = vadd.f32 %v1513, %v1600
        %v1602 = vpop.f32.mrb[0].mxu0
        %v1603 = vpop.f32.mrb[0].mxu0
        %v1604 = vpop.f32.mrb[0].mxu0
        %1605 = vdwg.mxu0
        %1606 = vmatprep.subr.bf16.mxu0 0
        %1607 = vmatpush1.bf16.msra.mxu0 %v1262
        %1608 = vmatprep.subr.bf16.mxu0 0
        %1609 = vmatpush1.bf16.msra.mxu0 %v1263
        %1610 = vmatprep.subr.bf16.mxu0 0
        %1611 = vmatpush1.bf16.msra.mxu0 %v1264
        %1612 = vmatprep.subr.bf16.mxu0 0
        %1613 = vmatpush1.bf16.msra.mxu0 %v1265
        %1614 = vmatprep.subr.bf16.mxu0 0
        %1615 = vmatpush1.bf16.msra.mxu0 %v1266
        %1616 = vmatprep.subr.bf16.mxu0 0
        %1617 = vmatpush1.bf16.msra.mxu0 %v1267
        %1618 = vmatprep.subr.bf16.mxu0 0
        %1619 = vmatpush1.bf16.msra.mxu0 %v1268
        %1620 = vmatprep.subr.bf16.mxu0 0
        %1621 = vmatpush1.bf16.msra.mxu0 %v1269
        %1622 = vmatprep.subr.bf16.mxu0 0
        %1623 = vmatpush1.bf16.msra.mxu0 %v1270
        %1624 = vmatprep.subr.bf16.mxu0 0
        %1625 = vmatpush1.bf16.msra.mxu0 %v1271
        %1626 = vmatprep.subr.bf16.mxu0 0
        %1627 = vmatpush1.bf16.msra.mxu0 %v1272
        %1628 = vmatprep.subr.bf16.mxu0 0
        %1629 = vmatpush1.bf16.msra.mxu0 %v1273
        %1630 = vmatprep.subr.bf16.mxu0 0
        %1631 = vmatpush1.bf16.msra.mxu0 %v1274
        %1632 = vmatprep.subr.bf16.mxu0 0
        %1633 = vmatpush1.bf16.msra.mxu0 %v1275
        %1634 = vmatprep.subr.bf16.mxu0 0
        %1635 = vmatpush1.bf16.msra.mxu0 %v1276
        %1636 = vmatprep.subr.bf16.mxu0 0
        %1637 = vmatpush1.bf16.msra.mxu0 %v1277
        %1638 = vmatprep.mubr.bf16.mxu0 %v853
        %1639 = vmatmul.mubr.bf16.gmra.mrb[0].mxu0 %v852
        %v1640 = vpop.f32.mrb[0].mxu0
        %v1641 = vadd.f32 %v1553, %v1640
        %v1642 = vpop.f32.mrb[0].mxu0
        %v1643 = vpop.f32.mrb[0].mxu0
        %v1644 = vadd.f32 %v1556, %v1643
        %v1645 = vpop.f32.mrb[0].mxu0
        %1646 = vmatprep.mubr.bf16.mxu0 %v861
        %1647 = vmatmul.mubr.bf16.gmra.mrb[0].mxu0 %v860
        %v1648 = vpop.f32.mrb[0].mxu0
        %v1649 = vadd.f32 %v1561, %v1648
        %v1650 = vpop.f32.mrb[0].mxu0
        %v1651 = vpop.f32.mrb[0].mxu0
        %v1652 = vadd.f32 %v1564, %v1651
        %v1653 = vpop.f32.mrb[0].mxu0
        %1654 = vmatprep.mubr.bf16.mxu0 %v869
        %1655 = vmatmul.mubr.bf16.gmra.mrb[0].mxu0 %v868
        %v1656 = vpop.f32.mrb[0].mxu0
        %v1657 = vadd.f32 %v1569, %v1656
        %v1658 = vpop.f32.mrb[0].mxu0
        %v1659 = vpop.f32.mrb[0].mxu0
        %v1660 = vadd.f32 %v1572, %v1659
        %v1661 = vpop.f32.mrb[0].mxu0
        %1662 = vmatprep.mubr.bf16.mxu0 %v877
        %1663 = vmatmul.mubr.bf16.gmra.mrb[0].mxu0 %v876
        %v1664 = vpop.f32.mrb[0].mxu0
        %v1665 = vadd.f32 %v1577, %v1664
        %v1666 = vpop.f32.mrb[0].mxu0
        %v1667 = vpop.f32.mrb[0].mxu0
        %v1668 = vadd.f32 %v1580, %v1667
        %v1669 = vpop.f32.mrb[0].mxu0
        %1670 = vmatprep.mubr.bf16.mxu0 %v885
        %1671 = vmatmul.mubr.bf16.gmra.mrb[0].mxu0 %v884
        %v1672 = vpop.f32.mrb[0].mxu0
        %v1673 = vadd.f32 %v1585, %v1672
        %v1674 = vpop.f32.mrb[0].mxu0
        %v1675 = vpop.f32.mrb[0].mxu0
        %v1676 = vadd.f32 %v1588, %v1675
        %v1677 = vpop.f32.mrb[0].mxu0
        %1678 = vmatprep.mubr.bf16.mxu0 %v893
        %1679 = vmatmul.mubr.bf16.gmra.mrb[0].mxu0 %v892
        %v1680 = vpop.f32.mrb[0].mxu0
        %v1681 = vadd.f32 %v1593, %v1680
        %v1682 = vpop.f32.mrb[0].mxu0
        %v1683 = vpop.f32.mrb[0].mxu0
        %v1684 = vadd.f32 %v1596, %v1683
        %v1685 = vpop.f32.mrb[0].mxu0
        %1686 = vmatprep.mubr.bf16.mxu0 %v901
        %1687 = vmatmul.mubr.bf16.gmra.mrb[0].mxu0 %v900
        %v1688 = vpop.f32.mrb[0].mxu0
        %v1689 = vadd.f32 %v1601, %v1688
        %v1690 = vpop.f32.mrb[0].mxu0
        %v1691 = vpop.f32.mrb[0].mxu0
        %v1692 = vpop.f32.mrb[0].mxu0
        %1693 = vdwg.mxu0
        %v1694 = vadd.f32 %v497, %v1641
        %v1695 = vadd.f32 %v498, %v1644
        %v1696 = vadd.f32 %v499, %v1649
        %v1697 = vadd.f32 %v500, %v1652
        %v1698 = vadd.f32 %v501, %v1657
        %v1699 = vadd.f32 %v502, %v1660
        %v1700 = vadd.f32 %v503, %v1665
        %v1701 = vadd.f32 %v504, %v1668
        %v1702 = vadd.f32 %v505, %v1673
        %v1703 = vadd.f32 %v506, %v1676
        %v1704 = vadd.f32 %v507, %v1681
        %v1705 = vadd.f32 %v508, %v1684
        %v1706 = vadd.f32 %v509, %v1689
        %1707 = vst [vmem:[#allocation2] sm:$0xff] %v1694
        %1708 = vst [vmem:[#allocation2 + $0x8] sm:$0xff] %v1695
        %1709 = vst [vmem:[#allocation2 + $0x10] sm:$0xff] %v1696
        %1710 = vst [vmem:[#allocation2 + $0x18] sm:$0xff] %v1697
        %1711 = vst [vmem:[#allocation2 + $0x20] sm:$0xff] %v1698
        %1712 = vst [vmem:[#allocation2 + $0x28] sm:$0xff] %v1699
        %1713 = vst [vmem:[#allocation2 + $0x30] sm:$0xff] %v1700
        %1714 = vst [vmem:[#allocation2 + $0x38] sm:$0xff] %v1701
        %1715 = vst [vmem:[#allocation2 + $0x40] sm:$0xff] %v1702
        %1716 = vst [vmem:[#allocation2 + $0x48] sm:$0xff] %v1703
        %1717 = vst [vmem:[#allocation2 + $0x50] sm:$0xff] %v1704
        %1718 = vst [vmem:[#allocation2 + $0x58] sm:$0xff] %v1705
        %1719 = vst [vmem:[#allocation2 + $0x60] sm:$0xff] %v1706
        // Predicated region
        $region77: #{tpu_custom_call.1} parent=51 // pred_check
          %p1720 = pneg %p480
        $region78: #{tpu_custom_call.1} parent=51 // pred_check_branch
          %1722 = sbr.rel (%p1720) target = $region80
        $region79: #{tpu_custom_call.1} parent=51 // pred_region
          %v1723 = vld [vmem:[%s470] sm:$0xff]
          %v1724 = vld [vmem:[%s470 + $0x8] sm:$0xff]
          %v1725 = vld [vmem:[%s470 + $0x10] sm:$0xff]
          %v1726 = vld [vmem:[%s470 + $0x18] sm:$0xff]
          %v1727 = vld [vmem:[%s470 + $0x20] sm:$0xff]
          %v1728 = vld [vmem:[%s470 + $0x28] sm:$0xff]
          %v1729 = vld [vmem:[%s470 + $0x30] sm:$0xff]
          %v1730 = vld [vmem:[%s470 + $0x38] sm:$0xff]
          %v1731 = vld [vmem:[%s470 + $0x40] sm:$0xff]
          %v1732 = vld [vmem:[%s470 + $0x48] sm:$0xff]
          %v1733 = vld [vmem:[%s470 + $0x50] sm:$0xff]
          %v1734 = vld [vmem:[%s470 + $0x58] sm:$0xff]
          %v1735 = vld [vmem:[%s470 + $0x60] sm:$0xff]
          %v1736 = vld [vmem:[%s476] sm:$0xff]
          %v1737 = vld [vmem:[%s476 + $0x8] sm:$0xff]
          %v1738 = vld [vmem:[%s476 + $0x10] sm:$0xff]
          %v1739 = vld [vmem:[%s476 + $0x18] sm:$0xff]
          %v1740 = vld [vmem:[%s476 + $0x20] sm:$0xff]
          %v1741 = vld [vmem:[%s476 + $0x28] sm:$0xff]
          %v1742 = vld [vmem:[%s476 + $0x30] sm:$0xff]
          %v1743 = vld [vmem:[%s476 + $0x38] sm:$0xff]
          %v1744 = vld [vmem:[%s476 + $0x40] sm:$0xff]
          %v1745 = vld [vmem:[%s476 + $0x48] sm:$0xff]
          %v1746 = vld [vmem:[%s476 + $0x50] sm:$0xff]
          %v1747 = vld [vmem:[%s476 + $0x58] sm:$0xff]
          %v1748 = vld [vmem:[%s476 + $0x60] sm:$0xff]
          %v1749 = vld [vmem:[#allocation2] sm:$0xff]
          %v1750 = vld [vmem:[#allocation2 + $0x8] sm:$0xff]
          %v1751 = vld [vmem:[#allocation2 + $0x10] sm:$0xff]
          %v1752 = vld [vmem:[#allocation2 + $0x18] sm:$0xff]
          %v1753 = vld [vmem:[#allocation2 + $0x20] sm:$0xff]
          %v1754 = vld [vmem:[#allocation2 + $0x28] sm:$0xff]
          %v1755 = vld [vmem:[#allocation2 + $0x30] sm:$0xff]
          %v1756 = vld [vmem:[#allocation2 + $0x38] sm:$0xff]
          %v1757 = vld [vmem:[#allocation2 + $0x40] sm:$0xff]
          %v1758 = vld [vmem:[#allocation2 + $0x48] sm:$0xff]
          %v1759 = vld [vmem:[#allocation2 + $0x50] sm:$0xff]
          %v1760 = vld [vmem:[#allocation2 + $0x58] sm:$0xff]
          %v1761 = vld [vmem:[#allocation2 + $0x60] sm:$0xff]
          %1763 = vset.pattern.permute.xlu0 0
          %1764 = vperm.xlu0 %1763, %v1736
          %v1765 = vpop.permute.xlu0 %1764
          %1768 = vset.pattern.permute.xlu0 0
          %1769 = vperm.xlu0 %1768, %v1737
          %v1770 = vpop.permute.xlu0 %1769
          %1773 = vset.pattern.permute.xlu0 0
          %1774 = vperm.xlu0 %1773, %v1738
          %v1775 = vpop.permute.xlu0 %1774
          %1778 = vset.pattern.permute.xlu0 0
          %1779 = vperm.xlu0 %1778, %v1739
          %v1780 = vpop.permute.xlu0 %1779
          %1783 = vset.pattern.permute.xlu0 0
          %1784 = vperm.xlu0 %1783, %v1740
          %v1785 = vpop.permute.xlu0 %1784
          %1788 = vset.pattern.permute.xlu0 0
          %1789 = vperm.xlu0 %1788, %v1741
          %v1790 = vpop.permute.xlu0 %1789
          %1793 = vset.pattern.permute.xlu0 0
          %1794 = vperm.xlu0 %1793, %v1742
          %v1795 = vpop.permute.xlu0 %1794
          %1798 = vset.pattern.permute.xlu0 0
          %1799 = vperm.xlu0 %1798, %v1743
          %v1800 = vpop.permute.xlu0 %1799
          %1803 = vset.pattern.permute.xlu0 0
          %1804 = vperm.xlu0 %1803, %v1744
          %v1805 = vpop.permute.xlu0 %1804
          %1808 = vset.pattern.permute.xlu0 0
          %1809 = vperm.xlu0 %1808, %v1745
          %v1810 = vpop.permute.xlu0 %1809
          %1813 = vset.pattern.permute.xlu0 0
          %1814 = vperm.xlu0 %1813, %v1746
          %v1815 = vpop.permute.xlu0 %1814
          %1818 = vset.pattern.permute.xlu0 0
          %1819 = vperm.xlu0 %1818, %v1747
          %v1820 = vpop.permute.xlu0 %1819
          %1823 = vset.pattern.permute.xlu0 0
          %1824 = vperm.xlu0 %1823, %v1748
          %v1825 = vpop.permute.xlu0 %1824
          %v1827 = vmul.f32 %v1765, %v1749
          %v1828 = vmul.f32 %v1770, %v1750
          %v1829 = vmul.f32 %v1775, %v1751
          %v1830 = vmul.f32 %v1780, %v1752
          %v1831 = vmul.f32 %v1785, %v1753
          %v1832 = vmul.f32 %v1790, %v1754
          %v1833 = vmul.f32 %v1795, %v1755
          %v1834 = vmul.f32 %v1800, %v1756
          %v1835 = vmul.f32 %v1805, %v1757
          %v1836 = vmul.f32 %v1810, %v1758
          %v1837 = vmul.f32 %v1815, %v1759
          %v1838 = vmul.f32 %v1820, %v1760
          %v1839 = vmul.f32 %v1825, %v1761
          %v1840 = vadd.f32 %v1723, %v1827
          %v1841 = vadd.f32 %v1724, %v1828
          %v1842 = vadd.f32 %v1725, %v1829
          %v1843 = vadd.f32 %v1726, %v1830
          %v1844 = vadd.f32 %v1727, %v1831
          %v1845 = vadd.f32 %v1728, %v1832
          %v1846 = vadd.f32 %v1729, %v1833
          %v1847 = vadd.f32 %v1730, %v1834
          %v1848 = vadd.f32 %v1731, %v1835
          %v1849 = vadd.f32 %v1732, %v1836
          %v1850 = vadd.f32 %v1733, %v1837
          %v1851 = vadd.f32 %v1734, %v1838
          %v1852 = vadd.f32 %v1735, %v1839
          %v1853 = vpack.c.bf16 %v1841, %v1840
          %v1854 = vpack.c.bf16 %v1843, %v1842
          %v1855 = vpack.c.bf16 %v1845, %v1844
          %v1856 = vpack.c.bf16 %v1847, %v1846
          %v1857 = vpack.c.bf16 %v1849, %v1848
          %v1858 = vpack.c.bf16 %v1851, %v1850
          %v1859 = vpack.c.bf16 %v1852, %v1852
          %v1860 = vld [vmem:[%s406] sm:$0xf]
          %v1861 = vld [vmem:[%s406 + $0x4] sm:$0xf]
          %v1862 = vld [vmem:[%s406 + $0x8] sm:$0xf]
          %v1863 = vld [vmem:[%s406 + $0xc] sm:$0xf]
          %v1864 = vld [vmem:[%s406 + $0x10] sm:$0xf]
          %v1865 = vld [vmem:[%s406 + $0x14] sm:$0xf]
          %v1866 = vld [vmem:[%s406 + $0x18] sm:$0xf]
          %v1867 = vld [vmem:[%s406 + $0x1c] sm:$0xf]
          %v1868 = vld [vmem:[%s406 + $0x20] sm:$0xf]
          %v1869 = vld [vmem:[%s406 + $0x24] sm:$0xf]
          %v1870 = vld [vmem:[%s406 + $0x28] sm:$0xf]
          %v1871 = vld [vmem:[%s406 + $0x2c] sm:$0xf]
          %v1872 = vld [vmem:[%s406 + $0x30] sm:$0xf]
          %v1873 = vld [vmem:[#allocation9] sm:$0xf]
          %v1874 = vld [vmem:[#allocation9 + $0x4] sm:$0xf]
          %v1875 = vld [vmem:[#allocation9 + $0x8] sm:$0xf]
          %v1876 = vld [vmem:[#allocation9 + $0xc] sm:$0xf]
          %v1877 = vld [vmem:[#allocation9 + $0x10] sm:$0xf]
          %v1878 = vld [vmem:[#allocation9 + $0x14] sm:$0xf]
          %v1879 = vld [vmem:[#allocation9 + $0x18] sm:$0xf]
          %v1880 = vld [vmem:[#allocation9 + $0x1c] sm:$0xf]
          %v1881 = vld [vmem:[#allocation9 + $0x20] sm:$0xf]
          %v1882 = vld [vmem:[#allocation9 + $0x24] sm:$0xf]
          %v1883 = vld [vmem:[#allocation9 + $0x28] sm:$0xf]
          %v1884 = vld [vmem:[#allocation9 + $0x2c] sm:$0xf]
          %v1885 = vld [vmem:[#allocation9 + $0x30] sm:$0xf]
          %v1886 = vld [vmem:[#allocation9 + $0x34] sm:$0xf]
          %v1887 = vld [vmem:[#allocation9 + $0x38] sm:$0xf]
          %v1888 = vld [vmem:[#allocation9 + $0x3c] sm:$0xf]
          %v1889 = vld [vmem:[#allocation10] sm:$0xf]
          %v1890 = vld [vmem:[#allocation10 + $0x4] sm:$0xf]
          %v1891 = vld [vmem:[#allocation10 + $0x8] sm:$0xf]
          %v1892 = vld [vmem:[#allocation10 + $0xc] sm:$0xf]
          %v1893 = vld [vmem:[#allocation10 + $0x10] sm:$0xf]
          %v1894 = vld [vmem:[#allocation10 + $0x14] sm:$0xf]
          %v1895 = vld [vmem:[#allocation10 + $0x18] sm:$0xf]
          %v1896 = vld [vmem:[#allocation10 + $0x1c] sm:$0xf]
          %v1897 = vld [vmem:[#allocation10 + $0x20] sm:$0xf]
          %v1898 = vld [vmem:[#allocation10 + $0x24] sm:$0xf]
          %v1899 = vld [vmem:[#allocation10 + $0x28] sm:$0xf]
          %v1900 = vld [vmem:[#allocation10 + $0x2c] sm:$0xf]
          %v1901 = vld [vmem:[#allocation10 + $0x30] sm:$0xf]
          %v1902 = vld [vmem:[#allocation10 + $0x34] sm:$0xf]
          %v1903 = vld [vmem:[#allocation10 + $0x38] sm:$0xf]
          %v1904 = vld [vmem:[#allocation10 + $0x3c] sm:$0xf]
          %v1921 = vunpack.c.l.b16 %v1889
          %v1922 = vunpack.c.l.b16 %v1890
          %v1923 = vunpack.c.l.b16 %v1891
          %v1924 = vunpack.c.l.b16 %v1892
          %v1925 = vunpack.c.l.b16 %v1893
          %v1926 = vunpack.c.l.b16 %v1894
          %v1927 = vunpack.c.l.b16 %v1895
          %v1928 = vunpack.c.l.b16 %v1896
          %v1929 = vunpack.c.l.b16 %v1897
          %v1930 = vunpack.c.l.b16 %v1898
          %v1931 = vunpack.c.l.b16 %v1899
          %v1932 = vunpack.c.l.b16 %v1900
          %v1933 = vunpack.c.l.b16 %v1901
          %v1934 = vunpack.c.l.b16 %v1902
          %v1935 = vunpack.c.l.b16 %v1903
          %v1936 = vunpack.c.l.b16 %v1904
          %v1937 = vpack.c.b16 %v1922, %v1921
          %v1938 = vpack.c.b16 %v1924, %v1923
          %v1939 = vpack.c.b16 %v1926, %v1925
          %v1940 = vpack.c.b16 %v1928, %v1927
          %v1941 = vpack.c.b16 %v1930, %v1929
          %v1942 = vpack.c.b16 %v1932, %v1931
          %v1943 = vpack.c.b16 %v1934, %v1933
          %v1944 = vpack.c.b16 %v1936, %v1935
          %1953 = vmatprep.subr.bf16.mxu0 0
          %1954 = vmatpush1.bf16.msra.mxu0 %v1937
          %1955 = vmatprep.subr.bf16.mxu0 0
          %1956 = vmatpush1.bf16.msra.mxu0 %v1938
          %1957 = vmatprep.subr.bf16.mxu0 0
          %1958 = vmatpush1.bf16.msra.mxu0 %v1939
          %1959 = vmatprep.subr.bf16.mxu0 0
          %1960 = vmatpush1.bf16.msra.mxu0 %v1940
          %1961 = vmatprep.subr.bf16.mxu0 0
          %1962 = vmatpush1.bf16.msra.mxu0 %v1941
          %1963 = vmatprep.subr.bf16.mxu0 0
          %1964 = vmatpush1.bf16.msra.mxu0 %v1942
          %1965 = vmatprep.subr.bf16.mxu0 0
          %1966 = vmatpush1.bf16.msra.mxu0 %v1943
          %1967 = vmatprep.subr.bf16.mxu0 0
          %1968 = vmatpush1.bf16.msra.mxu0 %v1944
          %1969 = vmatprep.subr.bf16.mxu0 0
          %1970 = vmatpush1.bf16.msra.mxu0 0
          %1971 = vmatprep.subr.bf16.mxu0 0
          %1972 = vmatpush1.bf16.msra.mxu0 0
          %1973 = vmatprep.subr.bf16.mxu0 0
          %1974 = vmatpush1.bf16.msra.mxu0 0
          %1975 = vmatprep.subr.bf16.mxu0 0
          %1976 = vmatpush1.bf16.msra.mxu0 0
          %1977 = vmatprep.subr.bf16.mxu0 0
          %1978 = vmatpush1.bf16.msra.mxu0 0
          %1979 = vmatprep.subr.bf16.mxu0 0
          %1980 = vmatpush1.bf16.msra.mxu0 0
          %1981 = vmatprep.subr.bf16.mxu0 0
          %1982 = vmatpush1.bf16.msra.mxu0 0
          %1983 = vmatprep.subr.bf16.mxu0 0
          %1984 = vmatpush1.bf16.msra.mxu0 0
          %1985 = vmatprep.mubr.bf16.mxu0 0
          %1986 = vmatmul.mubr.bf16.gmra.mrb[0].mxu0 %v1853
          %v1987 = vpop.f32.mrb[0].mxu0
          %v1988 = vadd.f32 0.0, %v1987
          %v1989 = vpop.f32.mrb[0].mxu0
          %v1990 = vpop.f32.mrb[0].mxu0
          %v1991 = vadd.f32 0.0, %v1990
          %v1992 = vpop.f32.mrb[0].mxu0
          %1993 = vmatprep.mubr.bf16.mxu0 0
          %1994 = vmatmul.mubr.bf16.gmra.mrb[0].mxu0 %v1854
          %v1995 = vpop.f32.mrb[0].mxu0
          %v1996 = vadd.f32 0.0, %v1995
          %v1997 = vpop.f32.mrb[0].mxu0
          %v1998 = vpop.f32.mrb[0].mxu0
          %v1999 = vadd.f32 0.0, %v1998
          %v2000 = vpop.f32.mrb[0].mxu0
          %2001 = vmatprep.mubr.bf16.mxu0 0
          %2002 = vmatmul.mubr.bf16.gmra.mrb[0].mxu0 %v1855
          %v2003 = vpop.f32.mrb[0].mxu0
          %v2004 = vadd.f32 0.0, %v2003
          %v2005 = vpop.f32.mrb[0].mxu0
          %v2006 = vpop.f32.mrb[0].mxu0
          %v2007 = vadd.f32 0.0, %v2006
          %v2008 = vpop.f32.mrb[0].mxu0
          %2009 = vmatprep.mubr.bf16.mxu0 0
          %2010 = vmatmul.mubr.bf16.gmra.mrb[0].mxu0 %v1856
          %v2011 = vpop.f32.mrb[0].mxu0
          %v2012 = vadd.f32 0.0, %v2011
          %v2013 = vpop.f32.mrb[0].mxu0
          %v2014 = vpop.f32.mrb[0].mxu0
          %v2015 = vadd.f32 0.0, %v2014
          %v2016 = vpop.f32.mrb[0].mxu0
          %2017 = vmatprep.mubr.bf16.mxu0 0
          %2018 = vmatmul.mubr.bf16.gmra.mrb[0].mxu0 %v1857
          %v2019 = vpop.f32.mrb[0].mxu0
          %v2020 = vadd.f32 0.0, %v2019
          %v2021 = vpop.f32.mrb[0].mxu0
          %v2022 = vpop.f32.mrb[0].mxu0
          %v2023 = vadd.f32 0.0, %v2022
          %v2024 = vpop.f32.mrb[0].mxu0
          %2025 = vmatprep.mubr.bf16.mxu0 0
          %2026 = vmatmul.mubr.bf16.gmra.mrb[0].mxu0 %v1858
          %v2027 = vpop.f32.mrb[0].mxu0
          %v2028 = vadd.f32 0.0, %v2027
          %v2029 = vpop.f32.mrb[0].mxu0
          %v2030 = vpop.f32.mrb[0].mxu0
          %v2031 = vadd.f32 0.0, %v2030
          %v2032 = vpop.f32.mrb[0].mxu0
          %2033 = vmatprep.mubr.bf16.mxu0 0
          %2034 = vmatmul.mubr.bf16.gmra.mrb[0].mxu0 %v1859
          %v2035 = vpop.f32.mrb[0].mxu0
          %v2036 = vadd.f32 0.0, %v2035
          %v2037 = vpop.f32.mrb[0].mxu0
          %v2038 = vpop.f32.mrb[0].mxu0
          %v2039 = vpop.f32.mrb[0].mxu0
          %2040 = vdwg.mxu0
          %v2054 = vunpack.c.l.b16 %v1860
          %v2055 = vunpack.c.l.b16 %v1861
          %v2056 = vunpack.c.l.b16 %v1862
          %v2057 = vunpack.c.l.b16 %v1863
          %v2058 = vunpack.c.l.b16 %v1864
          %v2059 = vunpack.c.l.b16 %v1865
          %v2060 = vunpack.c.l.b16 %v1866
          %v2061 = vunpack.c.l.b16 %v1867
          %v2062 = vunpack.c.l.b16 %v1868
          %v2063 = vunpack.c.l.b16 %v1869
          %v2064 = vunpack.c.l.b16 %v1870
          %v2065 = vunpack.c.l.b16 %v1871
          %v2066 = vunpack.c.l.b16 %v1872
          %v2067 = vpack.c.b16 %v2055, %v2054
          %v2068 = vpack.c.b16 %v2057, %v2056
          %v2069 = vpack.c.b16 %v2059, %v2058
          %v2070 = vpack.c.b16 %v2061, %v2060
          %v2071 = vpack.c.b16 %v2063, %v2062
          %v2072 = vpack.c.b16 %v2065, %v2064
          %v2073 = vpack.c.b16 %v2066, %v2066
          %v2097 = vunpack.c.l.b16 %v1873
          %v2098 = vunpack.c.l.b16 %v1874
          %v2099 = vunpack.c.l.b16 %v1875
          %v2100 = vunpack.c.l.b16 %v1876
          %v2101 = vunpack.c.l.b16 %v1877
          %v2102 = vunpack.c.l.b16 %v1878
          %v2103 = vunpack.c.l.b16 %v1879
          %v2104 = vunpack.c.l.b16 %v1880
          %v2105 = vunpack.c.l.b16 %v1881
          %v2106 = vunpack.c.l.b16 %v1882
          %v2107 = vunpack.c.l.b16 %v1883
          %v2108 = vunpack.c.l.b16 %v1884
          %v2109 = vunpack.c.l.b16 %v1885
          %v2110 = vunpack.c.l.b16 %v1886
          %v2111 = vunpack.c.l.b16 %v1887
          %v2112 = vunpack.c.l.b16 %v1888
          %v2113 = vpack.c.b16 %v2098, %v2097
          %v2114 = vpack.c.b16 %v2100, %v2099
          %v2115 = vpack.c.b16 %v2102, %v2101
          %v2116 = vpack.c.b16 %v2104, %v2103
          %v2117 = vpack.c.b16 %v2106, %v2105
          %v2118 = vpack.c.b16 %v2108, %v2107
          %v2119 = vpack.c.b16 %v2110, %v2109
          %v2120 = vpack.c.b16 %v2112, %v2111
          %2129 = vmatprep.subr.bf16.mxu0 0
          %2130 = vmatpush1.bf16.msra.mxu0 %v2113
          %2131 = vmatprep.subr.bf16.mxu0 0
          %2132 = vmatpush1.bf16.msra.mxu0 %v2114
          %2133 = vmatprep.subr.bf16.mxu0 0
          %2134 = vmatpush1.bf16.msra.mxu0 %v2115
          %2135 = vmatprep.subr.bf16.mxu0 0
          %2136 = vmatpush1.bf16.msra.mxu0 %v2116
          %2137 = vmatprep.subr.bf16.mxu0 0
          %2138 = vmatpush1.bf16.msra.mxu0 %v2117
          %2139 = vmatprep.subr.bf16.mxu0 0
          %2140 = vmatpush1.bf16.msra.mxu0 %v2118
          %2141 = vmatprep.subr.bf16.mxu0 0
          %2142 = vmatpush1.bf16.msra.mxu0 %v2119
          %2143 = vmatprep.subr.bf16.mxu0 0
          %2144 = vmatpush1.bf16.msra.mxu0 %v2120
          %2145 = vmatprep.subr.bf16.mxu0 0
          %2146 = vmatpush1.bf16.msra.mxu0 0
          %2147 = vmatprep.subr.bf16.mxu0 0
          %2148 = vmatpush1.bf16.msra.mxu0 0
          %2149 = vmatprep.subr.bf16.mxu0 0
          %2150 = vmatpush1.bf16.msra.mxu0 0
          %2151 = vmatprep.subr.bf16.mxu0 0
          %2152 = vmatpush1.bf16.msra.mxu0 0
          %2153 = vmatprep.subr.bf16.mxu0 0
          %2154 = vmatpush1.bf16.msra.mxu0 0
          %2155 = vmatprep.subr.bf16.mxu0 0
          %2156 = vmatpush1.bf16.msra.mxu0 0
          %2157 = vmatprep.subr.bf16.mxu0 0
          %2158 = vmatpush1.bf16.msra.mxu0 0
          %2159 = vmatprep.subr.bf16.mxu0 0
          %2160 = vmatpush1.bf16.msra.mxu0 0
          %2161 = vmatprep.mubr.bf16.mxu0 0
          %2162 = vmatmul.mubr.bf16.gmra.mrb[0].mxu0 %v2067
          %v2163 = vpop.f32.mrb[0].mxu0
          %v2164 = vadd.f32 %v1988, %v2163
          %v2165 = vpop.f32.mrb[0].mxu0
          %v2166 = vpop.f32.mrb[0].mxu0
          %v2167 = vadd.f32 %v1991, %v2166
          %v2168 = vpop.f32.mrb[0].mxu0
          %2169 = vmatprep.mubr.bf16.mxu0 0
          %2170 = vmatmul.mubr.bf16.gmra.mrb[0].mxu0 %v2068
          %v2171 = vpop.f32.mrb[0].mxu0
          %v2172 = vadd.f32 %v1996, %v2171
          %v2173 = vpop.f32.mrb[0].mxu0
          %v2174 = vpop.f32.mrb[0].mxu0
          %v2175 = vadd.f32 %v1999, %v2174
          %v2176 = vpop.f32.mrb[0].mxu0
          %2177 = vmatprep.mubr.bf16.mxu0 0
          %2178 = vmatmul.mubr.bf16.gmra.mrb[0].mxu0 %v2069
          %v2179 = vpop.f32.mrb[0].mxu0
          %v2180 = vadd.f32 %v2004, %v2179
          %v2181 = vpop.f32.mrb[0].mxu0
          %v2182 = vpop.f32.mrb[0].mxu0
          %v2183 = vadd.f32 %v2007, %v2182
          %v2184 = vpop.f32.mrb[0].mxu0
          %2185 = vmatprep.mubr.bf16.mxu0 0
          %2186 = vmatmul.mubr.bf16.gmra.mrb[0].mxu0 %v2070
          %v2187 = vpop.f32.mrb[0].mxu0
          %v2188 = vadd.f32 %v2012, %v2187
          %v2189 = vpop.f32.mrb[0].mxu0
          %v2190 = vpop.f32.mrb[0].mxu0
          %v2191 = vadd.f32 %v2015, %v2190
          %v2192 = vpop.f32.mrb[0].mxu0
          %2193 = vmatprep.mubr.bf16.mxu0 0
          %2194 = vmatmul.mubr.bf16.gmra.mrb[0].mxu0 %v2071
          %v2195 = vpop.f32.mrb[0].mxu0
          %v2196 = vadd.f32 %v2020, %v2195
          %v2197 = vpop.f32.mrb[0].mxu0
          %v2198 = vpop.f32.mrb[0].mxu0
          %v2199 = vadd.f32 %v2023, %v2198
          %v2200 = vpop.f32.mrb[0].mxu0
          %2201 = vmatprep.mubr.bf16.mxu0 0
          %2202 = vmatmul.mubr.bf16.gmra.mrb[0].mxu0 %v2072
          %v2203 = vpop.f32.mrb[0].mxu0
          %v2204 = vadd.f32 %v2028, %v2203
          %v2205 = vpop.f32.mrb[0].mxu0
          %v2206 = vpop.f32.mrb[0].mxu0
          %v2207 = vadd.f32 %v2031, %v2206
          %v2208 = vpop.f32.mrb[0].mxu0
          %2209 = vmatprep.mubr.bf16.mxu0 0
          %2210 = vmatmul.mubr.bf16.gmra.mrb[0].mxu0 %v2073
          %v2211 = vpop.f32.mrb[0].mxu0
          %v2212 = vadd.f32 %v2036, %v2211
          %v2213 = vpop.f32.mrb[0].mxu0
          %v2214 = vpop.f32.mrb[0].mxu0
          %v2215 = vpop.f32.mrb[0].mxu0
          %2216 = vdwg.mxu0
          %v2217 = vld [vmem:[%s7] sm:$0x1]
          %v2219 = vlaneseq
          %v2220 = vshrl.u32 %v2219, 7
          %v2221 = vsub.s32 0, %v2220
          %v2222 = vrot.slane %v2217, %v2221
          %v2224 = vadd.f32 %v2164, %v2222
          %v2225 = vadd.f32 %v2167, %v2222
          %v2226 = vadd.f32 %v2172, %v2222
          %v2227 = vadd.f32 %v2175, %v2222
          %v2228 = vadd.f32 %v2180, %v2222
          %v2229 = vadd.f32 %v2183, %v2222
          %v2230 = vadd.f32 %v2188, %v2222
          %v2231 = vadd.f32 %v2191, %v2222
          %v2232 = vadd.f32 %v2196, %v2222
          %v2233 = vadd.f32 %v2199, %v2222
          %v2234 = vadd.f32 %v2204, %v2222
          %v2235 = vadd.f32 %v2207, %v2222
          %v2236 = vadd.f32 %v2212, %v2222
          %v2237 = vmax.f32 %v2224, 0.0
          %v2238 = vmax.f32 %v2225, 0.0
          %v2239 = vmax.f32 %v2226, 0.0
          %v2240 = vmax.f32 %v2227, 0.0
          %v2241 = vmax.f32 %v2228, 0.0
          %v2242 = vmax.f32 %v2229, 0.0
          %v2243 = vmax.f32 %v2230, 0.0
          %v2244 = vmax.f32 %v2231, 0.0
          %v2245 = vmax.f32 %v2232, 0.0
          %v2246 = vmax.f32 %v2233, 0.0
          %v2247 = vmax.f32 %v2234, 0.0
          %v2248 = vmax.f32 %v2235, 0.0
          %v2249 = vmax.f32 %v2236, 0.0
          %2250 = vst [vmem:[%s461] sm:$0xff] %v2237
          %2251 = vst [vmem:[%s461 + $0x8] sm:$0xff] %v2238
          %2252 = vst [vmem:[%s461 + $0x10] sm:$0xff] %v2239
          %2253 = vst [vmem:[%s461 + $0x18] sm:$0xff] %v2240
          %2254 = vst [vmem:[%s461 + $0x20] sm:$0xff] %v2241
          %2255 = vst [vmem:[%s461 + $0x28] sm:$0xff] %v2242
          %2256 = vst [vmem:[%s461 + $0x30] sm:$0xff] %v2243
          %2257 = vst [vmem:[%s461 + $0x38] sm:$0xff] %v2244
          %2258 = vst [vmem:[%s461 + $0x40] sm:$0xff] %v2245
          %2259 = vst [vmem:[%s461 + $0x48] sm:$0xff] %v2246
          %2260 = vst [vmem:[%s461 + $0x50] sm:$0xff] %v2247
          %2261 = vst [vmem:[%s461 + $0x58] sm:$0xff] %v2248
          %2262 = vst [vmem:[%s461 + $0x60] sm:$0xff] %v2249
        $region80: #{tpu_custom_call.1} parent=51 // pred_fallthru
          _
        %s2263 = sand.u32 %s242, 1
        %s2264 = scalar_lea.sflag [#allocation5], %s2263
        %s2265 = sand.u32 %s242, 1
        %s2266 = smul.addr %s2265, 104
        %s2267 = scalar_lea.vmem [#allocation12], %s2266
        // Predicated region
        $region81: #{tpu_custom_call.1} parent=51 // pred_check
          %p2268 = pneg %p252
        $region82: #{tpu_custom_call.1} parent=51 // pred_check_branch
          %2270 = sbr.rel (%p2268) target = $region84
        $region83: #{tpu_custom_call.1} parent=51 // pred_region
          %s2271 = smul.u32 13, %s31
          %s2273 = ssub.s32 1664, 1664
          %2274 = vsyncadd %s2264, %s2273
          %s2275 = smul.addr %s2271, 128
          %s2276 = scalar_lea.hbm %s8, %s2275
          %s2277 = sshll.u32 %s2267, 4
          %s2278 = int_to_ptr.vmem [resolvable:$true] %s2277
          %2283 = dma.vmem_to_hbm [thread:$0]  %s2278, 1664, %s2276, %s2264, 128, 128, 8
        $region84: #{tpu_custom_call.1} parent=51 // pred_fallthru
          _
      $region52: #{tpu_custom_call.1} parent=5 // pred_fallthru
        _
      %p2284 = scmp.le.s32.totalorder 2, %s22
      // Predicated region
      $region85: #{tpu_custom_call.1} parent=5 // pred_check
        %p2285 = pneg %p2284
      $region86: #{tpu_custom_call.1} parent=5 // pred_check_branch
        %2287 = sbr.rel (%p2285) target = $region88
      $region87: #{tpu_custom_call.1} parent=5 // pred_region
        %s2288 = ssub.s32 %s22, 2
        // Predicated region
        $region89: #{tpu_custom_call.1} parent=87 // pred_check
          %p2289 = pneg %p258
        $region90: #{tpu_custom_call.1} parent=87 // pred_check_branch
          %2291 = sbr.rel (%p2289) target = $region92
        $region91: #{tpu_custom_call.1} parent=87 // pred_region
          %s2292 = sand.u32 %s243, 1
          %s2293 = scalar_lea.sflag [#allocation5], %s2292
          %s2294 = sand.u32 %s243, 1
          %s2295 = smul.addr %s2294, 104
          %s2296 = scalar_lea.vmem [#allocation12], %s2295
          %2297 = dma.done %s2293, 1664
        $region92: #{tpu_custom_call.1} parent=87 // pred_fallthru
          _
      $region88: #{tpu_custom_call.1} parent=5 // pred_fallthru
        _
    $region6: #{tpu_custom_call.1} parent=1 // loop_footer
      %s26 = sadd.s32 1, %s22
    $region7: #{tpu_custom_call.1} parent=1 // loop_footer_branch
      %21 = sbr.rel target = $region3
    $region8: #{tpu_custom_call.1} parent=1 // loop_exit
      _
    %2298 = vsyncpa [#allocation4], 1
    %s2299 = scalar_lea.sflag [#allocation4], 1
    %2300 = vsyncpa %s2299, 1
    %2301 = vsyncpa [#allocation7], 1
    %2302 = vsyncpa [#allocation11], 1
    %2303 = vsyncpa [#allocation5], 1
    %s2304 = scalar_lea.sflag [#allocation5], 1
    %2305 = vsyncpa %s2304, 1

</llo_original>
